<compile_context>
chip_gen: v6e
topology: v6e:2x2x1
jax: 0.10.0
libtpu: 0.0.40
codegen_flags: <defaults>
</compile_context>

<pallas_src>
import functools

import jax
import jax.numpy as jnp
from jax import lax
from jax.experimental import pallas as pl
from jax.experimental.pallas import tpu as pltpu


# ----------------------------- small helpers -------------------------------- #
def _round_up(x, m):
    return ((x + m - 1) // m) * m


def _next_pow2(x):
    x = int(x)
    return 1 if x <= 1 else 1 << (x - 1).bit_length()


def _hann_window(win_size):
    # torch.hann_window(win_size) (periodic): 0.5 - 0.5*cos(2*pi*n/N)
    n = jnp.arange(win_size, dtype=jnp.float32)
    return 0.5 - 0.5 * jnp.cos(2.0 * jnp.pi * n / win_size)


def _padded_window(fft_size, win_size):
    # torch.stft centers a win_size window inside an fft_size frame.
    w = _hann_window(win_size)
    lpad = (fft_size - win_size) // 2
    return jnp.pad(w, (lpad, fft_size - win_size - lpad))


def _reflect_pad(x, fft_size):
    # torch.stft(center=True, pad_mode='reflect') signal padding.
    pad = fft_size // 2
    return jnp.pad(x, ((0, 0), (pad, pad)), mode="reflect")


def _dft_basis(fft_size, win_size, f_bins):
    # Hann window folded into the DFT basis; cos | sin halves, f_bins = fft//2
    # columns each (bins k = 0 .. fft//2-1; the Nyquist bin lives in the wrapper).
    w = _padded_window(fft_size, win_size)
    n = jnp.arange(fft_size, dtype=jnp.float32)[:, None]
    k = jnp.arange(f_bins, dtype=jnp.float32)[None, :]
    ang = 2.0 * jnp.pi * n * k / fft_size
    cos_m = w[:, None] * jnp.cos(ang)
    sin_m = w[:, None] * jnp.sin(ang)            # sign irrelevant (|.|^2)
    return jnp.concatenate([cos_m, sin_m], axis=1)   # (fft, 2*f_bins) f32


def _nyquist_real(xp, fft_size, hop_size, win_size):
    # Real part of the k = fft/2 bin for every frame (its imag part is 0): one
    # strided correlation over the padded signal (<1% of the kernel's FLOPs).
    w = _padded_window(fft_size, win_size)
    filt = w * jnp.cos(jnp.pi * jnp.arange(fft_size, dtype=jnp.float32))
    out = lax.conv_general_dilated(
        xp[:, None, :], filt[None, None, :], window_strides=(hop_size,),
        padding="VALID", dimension_numbers=("NCH", "OIH", "NCH"))
    return out[:, 0, :]                              # (B, n_frames) f32


def _prep_slabs(xp, hop_size, tm, ns, slab_rows):
    # Hop-strided rows of the padded signal, one overlapping slab per frame
    # tile (overlap is only fft//hop rows -> ~1% extra HBM vs the raw signal).
    b, length = xp.shape
    n_rows = (ns - 1) * tm + slab_rows
    need = n_rows * hop_size
    if need >= length:
        xp = jnp.pad(xp, ((0, 0), (0, need - length)))
    else:
        xp = xp[:, :need]                            # tail unused by real frames
    x3 = xp.reshape(b, n_rows, hop_size)
    idx = jnp.arange(ns)[:, None] * tm + jnp.arange(slab_rows)[None, :]
    return jnp.take(x3, idx, axis=1)                 # (B, ns, slab_rows, hop)


def _prep_frames(xp, fft_size, hop_size, tm, ns):
    # Fallback path: materialize frames with an XLA gather (fft/hop x signal).
    b, length = xp.shape
    need = (ns * tm - 1) * hop_size + fft_size
    if need >= length:
        xp = jnp.pad(xp, ((0, 0), (0, need - length)))
    else:
        xp = xp[:, :need]
    idx = jnp.arange(ns * tm)[:, None] * hop_size + jnp.arange(fft_size)[None, :]
    return xp[:, idx].reshape(b, ns, tm, fft_size)   # (B, ns, tm, fft)


# ----------------------------- Pallas kernel -------------------------------- #
def _stft_loss_kernel(p_ref, t_ref, basis_ref, part_ref, frames_ref, *,
                      tm, f_bins, fft_size, hop_size, n_frames, from_slab):
    cdt = frames_ref.dtype

    def assemble(src_ref, row0):
        if from_slab:
            # Build the (tm, fft) frame matrix from the hop-strided slab with
            # fft//hop (+1) shifted block copies (VMEM only, hidden under MXU).
            r_full, rem = divmod(fft_size, hop_size)
            s = src_ref[...].astype(jnp.float32)         # (slab_rows, hop) f32
            for j in range(r_full):
                frames_ref[row0:row0 + tm, j * hop_size:(j + 1) * hop_size] = (
                    s[j:j + tm, :].astype(cdt))
            if rem:
                frames_ref[row0:row0 + tm, r_full * hop_size:fft_size] = (
                    s[r_full:r_full + tm, :rem].astype(cdt))
        else:
            frames_ref[row0:row0 + tm, :] = src_ref[...]

    assemble(p_ref, 0)           # predict frames -> rows [0, tm)
    assemble(t_ref, tm)          # target frames  -> rows [tm, 2*tm)

    # One fused MXU matmul: [pred ; tgt] frames @ [cos | sin] basis.
    y = jnp.dot(frames_ref[...], basis_ref[...],
                preferred_element_type=jnp.float32)      # (2*tm, 2*f_bins) f32

    re_p, im_p = y[:tm, :f_bins], y[:tm, f_bins:]
    re_t, im_t = y[tm:, :f_bins], y[tm:, f_bins:]
    pow_p = jnp.maximum(re_p * re_p + im_p * im_p, 1e-7)
    pow_t = jnp.maximum(re_t * re_t + im_t * im_t, 1e-7)

    # Mask frames beyond the true frame count (only the last tile is partial).
    row = lax.broadcasted_iota(jnp.int32, (tm, 1), 0)
    valid = ((pl.program_id(1) * tm + row) < n_frames).astype(jnp.float32)

    # (mag_t - mag_p)^2 with a single sqrt; mag_t^2; |log mag_p - log mag_t|.
    t0 = (pow_p + pow_t - 2.0 * jnp.sqrt(pow_p * pow_t)) * valid
    t1 = pow_t * valid
    t2 = (0.5 * jnp.abs(jnp.log(pow_p) - jnp.log(pow_t))) * valid

    def rowsum8(v):
        # (tm, f_bins) -> (8, f_bins): pairwise tree of sublane-aligned adds
        # (log2 depth, independent VALU adds per level, no XLU reduce).
        r = v.shape[0]
        while r > 8:
            r //= 2
            v = v[:r, :] + v[r:, :]
        return v

    part_ref[0:8, :] = rowsum8(t0)
    part_ref[8:16, :] = rowsum8(t1)
    part_ref[16:24, :] = rowsum8(t2)


# ----------------------------- wrapper -------------------------------------- #
@functools.partial(
    jax.jit,
    static_argnames=("fft_size", "hop_size", "win_size", "tm", "compute_dtype",
                     "framing", "single_buffer_basis"))
def stft_loss(predicts, targets, *, fft_size=1024, hop_size=120, win_size=600,
              tm=None, compute_dtype=jnp.bfloat16, framing="slab",
              single_buffer_basis=True):
    assert predicts.shape == targets.shape and predicts.ndim == 2
    assert win_size <= fft_size and hop_size <= fft_size
    b, t_len = predicts.shape
    f_bins = fft_size // 2                    # in-kernel bins (Nyquist handled below)
    n_freq = f_bins + 1
    n_frames = 1 + t_len // hop_size
    r_full, rem = divmod(fft_size, hop_size)
    r_span = r_full + (1 if rem else 0)

    # Frame tile: power of two, big enough to amortize grid-step overhead,
    # small enough to stay inside v7x's VMEM at fft_size=1024.
    if tm is None:
        tm = 1024 if fft_size <= 512 else 512
    tm = 1 << max(4, int(tm).bit_length() - 1)           # round down to pow2, >=16
    tm = max(16, min(tm, _next_pow2(n_frames)))
    ns = pl.cdiv(n_frames, tm)
    while b * ns < 2 and tm > 16:             # keep >= 2 grid steps (v7x megacore)
        tm //= 2
        ns = pl.cdiv(n_frames, tm)

    cdt = jnp.dtype(compute_dtype)
    xp_p = _reflect_pad(predicts.astype(jnp.float32), fft_size)
    xp_t = _reflect_pad(targets.astype(jnp.float32), fft_size)
    basis = _dft_basis(fft_size, win_size, f_bins).astype(cdt)

    if framing == "slab":
        slab_rows = _round_up(tm + r_span - 1, 8)
        in_p = _prep_slabs(xp_p, hop_size, tm, ns, slab_rows).astype(cdt)
        in_t = _prep_slabs(xp_t, hop_size, tm, ns, slab_rows).astype(cdt)
        lhs_spec = pl.BlockSpec((None, None, slab_rows, hop_size),
                                lambda bi, ti: (bi, ti, 0, 0))
        lhs_bytes = slab_rows * hop_size * cdt.itemsize
    else:
        in_p = _prep_frames(xp_p.astype(cdt), fft_size, hop_size, tm, ns)
        in_t = _prep_frames(xp_t.astype(cdt), fft_size, hop_size, tm, ns)
        lhs_spec = pl.BlockSpec((None, None, tm, fft_size),
                                lambda bi, ti: (bi, ti, 0, 0))
        lhs_bytes = tm * fft_size * cdt.itemsize

    basis_map = lambda bi, ti: (0, 0)
    basis_spec = pl.BlockSpec((fft_size, 2 * f_bins), basis_map)
    basis_copies = 2
    if single_buffer_basis:
        try:
            # Constant across the grid -> one VMEM buffer is enough (v7x VMEM).
            basis_spec = pl.BlockSpec((fft_size, 2 * f_bins), basis_map,
                                      pipeline_mode=pl.Buffered(1))
            basis_copies = 1
        except Exception:
            pass

    kernel = functools.partial(
        _stft_loss_kernel, tm=tm, f_bins=f_bins, fft_size=fft_size,
        hop_size=hop_size, n_frames=n_frames, from_slab=(framing == "slab"))

    # VMEM budget: double-buffered inputs + basis + frame scratch + f32 matmul
    # result / pointwise temporaries (compiler-managed) -> explicit limit.
    est_vmem = (2 * 2 * lhs_bytes
                + basis_copies * fft_size * 2 * f_bins * cdt.itemsize
                + 2 * tm * fft_size * cdt.itemsize
                + (2 * tm * 2 * f_bins + 8 * tm * f_bins) * 4
                + 2 * 24 * f_bins * 4)
    vmem_limit = int(min(64 * 2**20, max(32 * 2**20, 2 * est_vmem)))

    m_total = b * ns * tm
    cost = pl.CostEstimate(
        flops=2 * (2 * m_total) * fft_size * (2 * f_bins),
        transcendentals=3 * m_total * f_bins,
        bytes_accessed=2 * int(in_p.size) * cdt.itemsize
                       + int(basis.size) * cdt.itemsize
                       + b * ns * 24 * f_bins * 4)

    partials = pl.pallas_call(
        kernel,
        out_shape=jax.ShapeDtypeStruct((b, ns, 24, f_bins), jnp.float32),
        grid_spec=pltpu.PrefetchScalarGridSpec(
            num_scalar_prefetch=0,
            grid=(b, ns),
            in_specs=[lhs_spec, lhs_spec, basis_spec],
            out_specs=pl.BlockSpec((None, None, 24, f_bins),
                                   lambda bi, ti: (bi, ti, 0, 0)),
            scratch_shapes=[pltpu.VMEM((2 * tm, fft_size), cdt)]),
        compiler_params=pltpu.CompilerParams(
            dimension_semantics=("parallel", "parallel"),
            vmem_limit_bytes=vmem_limit),
        cost_estimate=cost,
    )(in_p, in_t, basis)

    # Final tiny combine in JAX (keeps the whole grid fully parallel).
    s_diff = jnp.sum(partials[:, :, 0:8, :])
    s_t2 = jnp.sum(partials[:, :, 8:16, :])
    s_log = jnp.sum(partials[:, :, 16:24, :])

    # Nyquist bin (k = fft/2, imag == 0): tiny f32 side computation.
    ny_p = _nyquist_real(xp_p, fft_size, hop_size, win_size)
    ny_t = _nyquist_real(xp_t, fft_size, hop_size, win_size)
    pw_p = jnp.maximum(ny_p * ny_p, 1e-7)
    pw_t = jnp.maximum(ny_t * ny_t, 1e-7)
    s_diff = s_diff + jnp.sum(pw_p + pw_t - 2.0 * jnp.sqrt(pw_p * pw_t))
    s_t2 = s_t2 + jnp.sum(pw_t)
    s_log = s_log + jnp.sum(0.5 * jnp.abs(jnp.log(pw_p) - jnp.log(pw_t)))

    sc = jnp.sqrt(s_diff) / jnp.sqrt(s_t2)            # SpectralConvergence
    mg = s_log / float(b * n_frames * n_freq)         # LogSTFTMagnitude (mean L1)
    return sc, mg


# ----------------------------- pure-JAX reference --------------------------- #
def _reference_loss(predicts, targets, fft_size, hop_size, win_size):
    n_freq = fft_size // 2 + 1
    w = _padded_window(fft_size, win_size)
    n = jnp.arange(fft_size, dtype=jnp.float32)[:, None]
    k = jnp.arange(n_freq, dtype=jnp.float32)[None, :]
    ang = 2.0 * jnp.pi * n * k / fft_size
    cos_m = w[:, None] * jnp.cos(ang)
    sin_m = w[:, None] * jnp.sin(ang)

    def mag(x):
        xp = _reflect_pad(x.astype(jnp.float32), fft_size)
        nfr = 1 + (xp.shape[1] - fft_size) // hop_size
        idx = jnp.arange(nfr)[:, None] * hop_size + jnp.arange(fft_size)[None, :]
        fr = xp[:, idx]
        re = jnp.einsum("bnk,kf->bnf", fr, cos_m)
        im = jnp.einsum("bnk,kf->bnf", fr, sin_m)
        return jnp.sqrt(jnp.maximum(re * re + im * im, 1e-7))

    pm, tmag = mag(predicts), mag(targets)
    sc = jnp.linalg.norm((tmag - pm).ravel()) / jnp.linalg.norm(tmag.ravel())
    mg = jnp.mean(jnp.abs(jnp.log(pm) - jnp.log(tmag)))
    return sc, mg


if __name__ == "__main__":
    key = jax.random.PRNGKey(0)
    k1, k2 = jax.random.split(key)
    B, T = 2, 2048
    FFT, HOP, WIN = 256, 64, 160   # scaled-down STFTLoss(fft_size, hop_size, win_size)

    predicts = jax.random.normal(k1, (B, T), dtype=jnp.float32)
    targets = jax.random.normal(k2, (B, T), dtype=jnp.float32)

    sc_r, mg_r = _reference_loss(predicts, targets, FFT, HOP, WIN)
    sc_r, mg_r = float(sc_r), float(mg_r)

    def run(**kw):
        sc, mg = stft_loss(predicts, targets, fft_size=FFT, hop_size=HOP,
                           win_size=WIN, **kw)
        jax.block_until_ready((sc, mg))
        return float(sc), float(mg)

    fallback_kw = {}
    try:
        sc, mg = run()            # bf16 MXU path, in-kernel framing from slabs
    except Exception:
        # Conservative fallback (wrapper-side framing, default basis buffering)
        # keeps the script runnable if this Mosaic build rejects the relayouts
        # used by in-kernel frame assembly.
        fallback_kw = dict(framing="frames", single_buffer_basis=False)
        sc, mg = run(**fallback_kw)

    assert abs(sc - sc_r) < 1e-2 * max(1.0, abs(sc_r)), (sc, sc_r)
    assert abs(mg - mg_r) < 1e-2 * max(1.0, abs(mg_r)), (mg, mg_r)

    # Full-precision path: tighter check against the pure-JAX reference.
    sc32, mg32 = run(compute_dtype=jnp.float32, **fallback_kw)
    assert abs(sc32 - sc_r) < 5e-3 * max(1.0, abs(sc_r)), (sc32, sc_r)
    assert abs(mg32 - mg_r) < 5e-3 * max(1.0, abs(mg_r)), (mg32, mg_r)

    print("KERNEL_OK")
</pallas_src>

<mosaic_0001>
module attributes {stable_mosaic.version = 11 : i64} {
  func.func @_stft_loss_kernel(%arg0: i32, %arg1: i32, %arg2: memref<1x1x72x64xbf16, #tpu.memory_space<vmem>>, %arg3: memref<1x1x72x64xbf16, #tpu.memory_space<vmem>>, %arg4: memref<256x256xbf16, #tpu.memory_space<vmem>>, %arg5: memref<1x1x24x128xf32, #tpu.memory_space<vmem>>, %arg6: memref<128x256xbf16, #tpu.memory_space<vmem>>) attributes {dimension_semantics = [#tpu.dimension_semantics<parallel>, #tpu.dimension_semantics<parallel>], iteration_bounds = array<i64: 2, 1>, scalar_prefetch = 0 : i64, scratch_operands = 1 : i64, tpu.core_type = #tpu.core_type<tc>, window_params = [{transform_indices = @transform_0, window_bounds = array<i64: 1, 1, 72, 64>}, {transform_indices = @transform_1, window_bounds = array<i64: 1, 1, 72, 64>}, {pipeline_mode = #tpu.pipeline_mode<synchronous>, transform_indices = @transform_2, window_bounds = array<i64: 256, 256>}, {transform_indices = @transform_3, window_bounds = array<i64: 1, 1, 24, 128>}]} {
    %c0 = arith.constant 0 : index
    %c0_0 = arith.constant 0 : index
    %c0_1 = arith.constant 0 : index
    %c0_2 = arith.constant 0 : index
    %0 = vector.load %arg2[%c0, %c0_0, %c0_1, %c0_2] : memref<1x1x72x64xbf16, #tpu.memory_space<vmem>>, vector<1x1x72x64xbf16>
    %1 = vector.shape_cast %0 : vector<1x1x72x64xbf16> to vector<72x64xbf16>
    %2 = arith.extf %1 : vector<72x64xbf16> to vector<72x64xf32>
    %3 = vector.extract_strided_slice %2 {offsets = [0, 0], sizes = [64, 64], strides = [1, 1]} : vector<72x64xf32> to vector<64x64xf32>
    %4 = arith.truncf %3 : vector<64x64xf32> to vector<64x64xbf16>
    %c0_3 = arith.constant 0 : index
    %c0_4 = arith.constant 0 : index
    %5 = vector.load %arg6[%c0_3, %c0_4] : memref<128x256xbf16, #tpu.memory_space<vmem>>, vector<64x64xbf16>
    tpu.vector_store %arg6[%c0_3, %c0_4], %4 {strides = array<i32>} : memref<128x256xbf16, #tpu.memory_space<vmem>>, vector<64x64xbf16>,
    %6 = vector.extract_strided_slice %2 {offsets = [1, 0], sizes = [64, 64], strides = [1, 1]} : vector<72x64xf32> to vector<64x64xf32>
    %7 = arith.truncf %6 : vector<64x64xf32> to vector<64x64xbf16>
    %c0_5 = arith.constant 0 : index
    %c64 = arith.constant 64 : index
    %8 = vector.load %arg6[%c0_5, %c64] : memref<128x256xbf16, #tpu.memory_space<vmem>>, vector<64x64xbf16>
    tpu.vector_store %arg6[%c0_5, %c64], %7 {strides = array<i32>} : memref<128x256xbf16, #tpu.memory_space<vmem>>, vector<64x64xbf16>,
    %9 = vector.extract_strided_slice %2 {offsets = [2, 0], sizes = [64, 64], strides = [1, 1]} : vector<72x64xf32> to vector<64x64xf32>
    %10 = arith.truncf %9 : vector<64x64xf32> to vector<64x64xbf16>
    %c0_6 = arith.constant 0 : index
    %c128 = arith.constant 128 : index
    %11 = vector.load %arg6[%c0_6, %c128] : memref<128x256xbf16, #tpu.memory_space<vmem>>, vector<64x64xbf16>
    tpu.vector_store %arg6[%c0_6, %c128], %10 {strides = array<i32>} : memref<128x256xbf16, #tpu.memory_space<vmem>>, vector<64x64xbf16>,
    %12 = vector.extract_strided_slice %2 {offsets = [3, 0], sizes = [64, 64], strides = [1, 1]} : vector<72x64xf32> to vector<64x64xf32>
    %13 = arith.truncf %12 : vector<64x64xf32> to vector<64x64xbf16>
    %c0_7 = arith.constant 0 : index
    %c192 = arith.constant 192 : index
    %14 = vector.load %arg6[%c0_7, %c192] : memref<128x256xbf16, #tpu.memory_space<vmem>>, vector<64x64xbf16>
    tpu.vector_store %arg6[%c0_7, %c192], %13 {strides = array<i32>} : memref<128x256xbf16, #tpu.memory_space<vmem>>, vector<64x64xbf16>,
    %c0_8 = arith.constant 0 : index
    %c0_9 = arith.constant 0 : index
    %c0_10 = arith.constant 0 : index
    %c0_11 = arith.constant 0 : index
    %15 = vector.load %arg3[%c0_8, %c0_9, %c0_10, %c0_11] : memref<1x1x72x64xbf16, #tpu.memory_space<vmem>>, vector<1x1x72x64xbf16>
    %16 = vector.shape_cast %15 : vector<1x1x72x64xbf16> to vector<72x64xbf16>
    %17 = arith.extf %16 : vector<72x64xbf16> to vector<72x64xf32>
    %18 = vector.extract_strided_slice %17 {offsets = [0, 0], sizes = [64, 64], strides = [1, 1]} : vector<72x64xf32> to vector<64x64xf32>
    %19 = arith.truncf %18 : vector<64x64xf32> to vector<64x64xbf16>
    %c64_12 = arith.constant 64 : index
    %c0_13 = arith.constant 0 : index
    %20 = vector.load %arg6[%c64_12, %c0_13] : memref<128x256xbf16, #tpu.memory_space<vmem>>, vector<64x64xbf16>
    tpu.vector_store %arg6[%c64_12, %c0_13], %19 {strides = array<i32>} : memref<128x256xbf16, #tpu.memory_space<vmem>>, vector<64x64xbf16>,
    %21 = vector.extract_strided_slice %17 {offsets = [1, 0], sizes = [64, 64], strides = [1, 1]} : vector<72x64xf32> to vector<64x64xf32>
    %22 = arith.truncf %21 : vector<64x64xf32> to vector<64x64xbf16>
    %c64_14 = arith.constant 64 : index
    %c64_15 = arith.constant 64 : index
    %23 = vector.load %arg6[%c64_14, %c64_15] : memref<128x256xbf16, #tpu.memory_space<vmem>>, vector<64x64xbf16>
    tpu.vector_store %arg6[%c64_14, %c64_15], %22 {strides = array<i32>} : memref<128x256xbf16, #tpu.memory_space<vmem>>, vector<64x64xbf16>,
    %24 = vector.extract_strided_slice %17 {offsets = [2, 0], sizes = [64, 64], strides = [1, 1]} : vector<72x64xf32> to vector<64x64xf32>
    %25 = arith.truncf %24 : vector<64x64xf32> to vector<64x64xbf16>
    %c64_16 = arith.constant 64 : index
    %c128_17 = arith.constant 128 : index
    %26 = vector.load %arg6[%c64_16, %c128_17] : memref<128x256xbf16, #tpu.memory_space<vmem>>, vector<64x64xbf16>
    tpu.vector_store %arg6[%c64_16, %c128_17], %25 {strides = array<i32>} : memref<128x256xbf16, #tpu.memory_space<vmem>>, vector<64x64xbf16>,
    %27 = vector.extract_strided_slice %17 {offsets = [3, 0], sizes = [64, 64], strides = [1, 1]} : vector<72x64xf32> to vector<64x64xf32>
    %28 = arith.truncf %27 : vector<64x64xf32> to vector<64x64xbf16>
    %c64_18 = arith.constant 64 : index
    %c192_19 = arith.constant 192 : index
    %29 = vector.load %arg6[%c64_18, %c192_19] : memref<128x256xbf16, #tpu.memory_space<vmem>>, vector<64x64xbf16>
    tpu.vector_store %arg6[%c64_18, %c192_19], %28 {strides = array<i32>} : memref<128x256xbf16, #tpu.memory_space<vmem>>, vector<64x64xbf16>,
    %c0_20 = arith.constant 0 : index
    %c0_21 = arith.constant 0 : index
    %30 = vector.load %arg6[%c0_20, %c0_21] : memref<128x256xbf16, #tpu.memory_space<vmem>>, vector<128x256xbf16>
    %c0_22 = arith.constant 0 : index
    %c0_23 = arith.constant 0 : index
    %31 = vector.load %arg4[%c0_22, %c0_23] : memref<256x256xbf16, #tpu.memory_space<vmem>>, vector<256x256xbf16>
    %cst = arith.constant dense<0.000000e+00> : vector<128x256xf32>
    %32 = tpu.matmul %30, %31, %cst {dimension_numbers = #tpu.dot_dimension_numbers<[1], [0], [0], [1], [0, 0, 1, 1], [], []>} : vector<128x256xbf16>, vector<256x256xbf16>, vector<128x256xf32> -> vector<128x256xf32>
    %33 = vector.extract_strided_slice %32 {offsets = [0, 0], sizes = [64, 128], strides = [1, 1]} : vector<128x256xf32> to vector<64x128xf32>
    %34 = vector.extract_strided_slice %32 {offsets = [0, 128], sizes = [64, 128], strides = [1, 1]} : vector<128x256xf32> to vector<64x128xf32>
    %35 = vector.extract_strided_slice %32 {offsets = [64, 0], sizes = [64, 128], strides = [1, 1]} : vector<128x256xf32> to vector<64x128xf32>
    %36 = vector.extract_strided_slice %32 {offsets = [64, 128], sizes = [64, 128], strides = [1, 1]} : vector<128x256xf32> to vector<64x128xf32>
    %37 = arith.mulf %33, %33 : vector<64x128xf32>
    %38 = arith.mulf %34, %34 : vector<64x128xf32>
    %39 = arith.addf %37, %38 : vector<64x128xf32>
    %cst_24 = arith.constant 1.000000e-07 : f32
    %40 = vector.broadcast %cst_24 : f32 to vector<64x128xf32>
    %41 = arith.maximumf %39, %40 : vector<64x128xf32>
    %42 = arith.mulf %35, %35 : vector<64x128xf32>
    %43 = arith.mulf %36, %36 : vector<64x128xf32>
    %44 = arith.addf %42, %43 : vector<64x128xf32>
    %cst_25 = arith.constant 1.000000e-07 : f32
    %45 = vector.broadcast %cst_25 : f32 to vector<64x128xf32>
    %46 = arith.maximumf %44, %45 : vector<64x128xf32>
    %47 = tpu.iota {dimensions = array<i32: 0>} : vector<64x1xi32>
    %c64_i32 = arith.constant 64 : i32
    %48 = arith.muli %arg1, %c64_i32 : i32
    %49 = vector.broadcast %48 : i32 to vector<64x1xi32>
    %50 = arith.addi %49, %47 : vector<64x1xi32>
    %c33_i32 = arith.constant 33 : i32
    %51 = vector.broadcast %c33_i32 : i32 to vector<64x1xi32>
    %52 = arith.cmpi slt, %50, %51 : vector<64x1xi32>
    %53 = arith.extui %52 : vector<64x1xi1> to vector<64x1xi32>
    %54 = arith.sitofp %53 : vector<64x1xi32> to vector<64x1xf32>
    %55 = arith.addf %41, %46 : vector<64x128xf32>
    %56 = arith.mulf %41, %46 : vector<64x128xf32>
    %57 = math.sqrt %56 : vector<64x128xf32>
    %cst_26 = arith.constant 2.000000e+00 : f32
    %58 = vector.broadcast %cst_26 : f32 to vector<64x128xf32>
    %59 = arith.mulf %58, %57 : vector<64x128xf32>
    %60 = arith.subf %55, %59 : vector<64x128xf32>
    %61 = vector.broadcast %54 : vector<64x1xf32> to vector<64x128xf32>
    %62 = arith.mulf %60, %61 : vector<64x128xf32>
    %63 = vector.broadcast %54 : vector<64x1xf32> to vector<64x128xf32>
    %64 = arith.mulf %46, %63 : vector<64x128xf32>
    %65 = math.log %41 : vector<64x128xf32>
    %66 = math.log %46 : vector<64x128xf32>
    %67 = arith.subf %65, %66 : vector<64x128xf32>
    %68 = math.absf %67 : vector<64x128xf32>
    %cst_27 = arith.constant 5.000000e-01 : f32
    %69 = vector.broadcast %cst_27 : f32 to vector<64x128xf32>
    %70 = arith.mulf %69, %68 : vector<64x128xf32>
    %71 = vector.broadcast %54 : vector<64x1xf32> to vector<64x128xf32>
    %72 = arith.mulf %70, %71 : vector<64x128xf32>
    %73 = vector.extract_strided_slice %62 {offsets = [0, 0], sizes = [32, 128], strides = [1, 1]} : vector<64x128xf32> to vector<32x128xf32>
    %74 = vector.extract_strided_slice %62 {offsets = [32, 0], sizes = [32, 128], strides = [1, 1]} : vector<64x128xf32> to vector<32x128xf32>
    %75 = arith.addf %73, %74 : vector<32x128xf32>
    %76 = vector.extract_strided_slice %75 {offsets = [0, 0], sizes = [16, 128], strides = [1, 1]} : vector<32x128xf32> to vector<16x128xf32>
    %77 = vector.extract_strided_slice %75 {offsets = [16, 0], sizes = [16, 128], strides = [1, 1]} : vector<32x128xf32> to vector<16x128xf32>
    %78 = arith.addf %76, %77 : vector<16x128xf32>
    %79 = vector.extract_strided_slice %78 {offsets = [0, 0], sizes = [8, 128], strides = [1, 1]} : vector<16x128xf32> to vector<8x128xf32>
    %80 = vector.extract_strided_slice %78 {offsets = [8, 0], sizes = [8, 128], strides = [1, 1]} : vector<16x128xf32> to vector<8x128xf32>
    %81 = arith.addf %79, %80 : vector<8x128xf32>
    %c0_28 = arith.constant 0 : index
    %c0_29 = arith.constant 0 : index
    %c0_30 = arith.constant 0 : index
    %c0_31 = arith.constant 0 : index
    %82 = vector.load %arg5[%c0_28, %c0_29, %c0_30, %c0_31] : memref<1x1x24x128xf32, #tpu.memory_space<vmem>>, vector<1x1x8x128xf32>
    %83 = vector.shape_cast %82 : vector<1x1x8x128xf32> to vector<8x128xf32>
    %84 = vector.shape_cast %81 : vector<8x128xf32> to vector<1x1x8x128xf32>
    tpu.vector_store %arg5[%c0_28, %c0_29, %c0_30, %c0_31], %84 {strides = array<i32>} : memref<1x1x24x128xf32, #tpu.memory_space<vmem>>, vector<1x1x8x128xf32>,
    %85 = vector.extract_strided_slice %64 {offsets = [0, 0], sizes = [32, 128], strides = [1, 1]} : vector<64x128xf32> to vector<32x128xf32>
    %86 = vector.extract_strided_slice %64 {offsets = [32, 0], sizes = [32, 128], strides = [1, 1]} : vector<64x128xf32> to vector<32x128xf32>
    %87 = arith.addf %85, %86 : vector<32x128xf32>
    %88 = vector.extract_strided_slice %87 {offsets = [0, 0], sizes = [16, 128], strides = [1, 1]} : vector<32x128xf32> to vector<16x128xf32>
    %89 = vector.extract_strided_slice %87 {offsets = [16, 0], sizes = [16, 128], strides = [1, 1]} : vector<32x128xf32> to vector<16x128xf32>
    %90 = arith.addf %88, %89 : vector<16x128xf32>
    %91 = vector.extract_strided_slice %90 {offsets = [0, 0], sizes = [8, 128], strides = [1, 1]} : vector<16x128xf32> to vector<8x128xf32>
    %92 = vector.extract_strided_slice %90 {offsets = [8, 0], sizes = [8, 128], strides = [1, 1]} : vector<16x128xf32> to vector<8x128xf32>
    %93 = arith.addf %91, %92 : vector<8x128xf32>
    %c0_32 = arith.constant 0 : index
    %c0_33 = arith.constant 0 : index
    %c8 = arith.constant 8 : index
    %c0_34 = arith.constant 0 : index
    %94 = vector.load %arg5[%c0_32, %c0_33, %c8, %c0_34] : memref<1x1x24x128xf32, #tpu.memory_space<vmem>>, vector<1x1x8x128xf32>
    %95 = vector.shape_cast %94 : vector<1x1x8x128xf32> to vector<8x128xf32>
    %96 = vector.shape_cast %93 : vector<8x128xf32> to vector<1x1x8x128xf32>
    tpu.vector_store %arg5[%c0_32, %c0_33, %c8, %c0_34], %96 {strides = array<i32>} : memref<1x1x24x128xf32, #tpu.memory_space<vmem>>, vector<1x1x8x128xf32>,
    %97 = vector.extract_strided_slice %72 {offsets = [0, 0], sizes = [32, 128], strides = [1, 1]} : vector<64x128xf32> to vector<32x128xf32>
    %98 = vector.extract_strided_slice %72 {offsets = [32, 0], sizes = [32, 128], strides = [1, 1]} : vector<64x128xf32> to vector<32x128xf32>
    %99 = arith.addf %97, %98 : vector<32x128xf32>
    %100 = vector.extract_strided_slice %99 {offsets = [0, 0], sizes = [16, 128], strides = [1, 1]} : vector<32x128xf32> to vector<16x128xf32>
    %101 = vector.extract_strided_slice %99 {offsets = [16, 0], sizes = [16, 128], strides = [1, 1]} : vector<32x128xf32> to vector<16x128xf32>
    %102 = arith.addf %100, %101 : vector<16x128xf32>
    %103 = vector.extract_strided_slice %102 {offsets = [0, 0], sizes = [8, 128], strides = [1, 1]} : vector<16x128xf32> to vector<8x128xf32>
    %104 = vector.extract_strided_slice %102 {offsets = [8, 0], sizes = [8, 128], strides = [1, 1]} : vector<16x128xf32> to vector<8x128xf32>
    %105 = arith.addf %103, %104 : vector<8x128xf32>
    %c0_35 = arith.constant 0 : index
    %c0_36 = arith.constant 0 : index
    %c16 = arith.constant 16 : index
    %c0_37 = arith.constant 0 : index
    %106 = vector.load %arg5[%c0_35, %c0_36, %c16, %c0_37] : memref<1x1x24x128xf32, #tpu.memory_space<vmem>>, vector<1x1x8x128xf32>
    %107 = vector.shape_cast %106 : vector<1x1x8x128xf32> to vector<8x128xf32>
    %108 = vector.shape_cast %105 : vector<8x128xf32> to vector<1x1x8x128xf32>
    tpu.vector_store %arg5[%c0_35, %c0_36, %c16, %c0_37], %108 {strides = array<i32>} : memref<1x1x24x128xf32, #tpu.memory_space<vmem>>, vector<1x1x8x128xf32>,
    return
  }
  func.func @transform_0(%arg0: i32, %arg1: i32) -> (i32, i32, i32, i32) {
    %c0_i32 = arith.constant 0 : i32
    %c0_i32_0 = arith.constant 0 : i32
    %c0_i32_1 = arith.constant 0 : i32
    return %arg0, %arg1, %c0_i32, %c0_i32_0 : i32, i32, i32, i32
  }
  func.func @transform_1(%arg0: i32, %arg1: i32) -> (i32, i32, i32, i32) {
    %c0_i32 = arith.constant 0 : i32
    %c0_i32_0 = arith.constant 0 : i32
    %c0_i32_1 = arith.constant 0 : i32
    return %arg0, %arg1, %c0_i32, %c0_i32_0 : i32, i32, i32, i32
  }
  func.func @transform_2(%arg0: i32, %arg1: i32) -> (i32, i32) {
    %c0_i32 = arith.constant 0 : i32
    %c0_i32_0 = arith.constant 0 : i32
    %c0_i32_1 = arith.constant 0 : i32
    return %c0_i32, %c0_i32_0 : i32, i32
  }
  func.func @transform_3(%arg0: i32, %arg1: i32) -> (i32, i32, i32, i32) {
    %c0_i32 = arith.constant 0 : i32
    %c0_i32_0 = arith.constant 0 : i32
    %c0_i32_1 = arith.constant 0 : i32
    return %arg0, %arg1, %c0_i32, %c0_i32_0 : i32, i32, i32, i32
  }
}

module attributes {stable_mosaic.version = 11 : i64} {
  func.func @_stft_loss_kernel(%arg0: i32, %arg1: i32, %arg2: memref<1x1x64x256xbf16, #tpu.memory_space<vmem>>, %arg3: memref<1x1x64x256xbf16, #tpu.memory_space<vmem>>, %arg4: memref<256x256xbf16, #tpu.memory_space<vmem>>, %arg5: memref<1x1x24x128xf32, #tpu.memory_space<vmem>>, %arg6: memref<128x256xbf16, #tpu.memory_space<vmem>>) attributes {dimension_semantics = [#tpu.dimension_semantics<parallel>, #tpu.dimension_semantics<parallel>], iteration_bounds = array<i64: 2, 1>, scalar_prefetch = 0 : i64, scratch_operands = 1 : i64, tpu.core_type = #tpu.core_type<tc>, window_params = [{transform_indices = @transform_0, window_bounds = array<i64: 1, 1, 64, 256>}, {transform_indices = @transform_1, window_bounds = array<i64: 1, 1, 64, 256>}, {pipeline_mode = #tpu.pipeline_mode<synchronous>, transform_indices = @transform_2, window_bounds = array<i64: 256, 256>}, {transform_indices = @transform_3, window_bounds = array<i64: 1, 1, 24, 128>}]} {
    %c0 = arith.constant 0 : index
    %c0_0 = arith.constant 0 : index
    %c0_1 = arith.constant 0 : index
    %c0_2 = arith.constant 0 : index
    %0 = vector.load %arg2[%c0, %c0_0, %c0_1, %c0_2] : memref<1x1x64x256xbf16, #tpu.memory_space<vmem>>, vector<1x1x64x256xbf16>
    %1 = vector.shape_cast %0 : vector<1x1x64x256xbf16> to vector<64x256xbf16>
    %c0_3 = arith.constant 0 : index
    %c0_4 = arith.constant 0 : index
    %2 = vector.load %arg6[%c0_3, %c0_4] : memref<128x256xbf16, #tpu.memory_space<vmem>>, vector<64x256xbf16>
    tpu.vector_store %arg6[%c0_3, %c0_4], %1 {strides = array<i32>} : memref<128x256xbf16, #tpu.memory_space<vmem>>, vector<64x256xbf16>,
    %c0_5 = arith.constant 0 : index
    %c0_6 = arith.constant 0 : index
    %c0_7 = arith.constant 0 : index
    %c0_8 = arith.constant 0 : index
    %3 = vector.load %arg3[%c0_5, %c0_6, %c0_7, %c0_8] : memref<1x1x64x256xbf16, #tpu.memory_space<vmem>>, vector<1x1x64x256xbf16>
    %4 = vector.shape_cast %3 : vector<1x1x64x256xbf16> to vector<64x256xbf16>
    %c64 = arith.constant 64 : index
    %c0_9 = arith.constant 0 : index
    %5 = vector.load %arg6[%c64, %c0_9] : memref<128x256xbf16, #tpu.memory_space<vmem>>, vector<64x256xbf16>
    tpu.vector_store %arg6[%c64, %c0_9], %4 {strides = array<i32>} : memref<128x256xbf16, #tpu.memory_space<vmem>>, vector<64x256xbf16>,
    %c0_10 = arith.constant 0 : index
    %c0_11 = arith.constant 0 : index
    %6 = vector.load %arg6[%c0_10, %c0_11] : memref<128x256xbf16, #tpu.memory_space<vmem>>, vector<128x256xbf16>
    %c0_12 = arith.constant 0 : index
    %c0_13 = arith.constant 0 : index
    %7 = vector.load %arg4[%c0_12, %c0_13] : memref<256x256xbf16, #tpu.memory_space<vmem>>, vector<256x256xbf16>
    %cst = arith.constant dense<0.000000e+00> : vector<128x256xf32>
    %8 = tpu.matmul %6, %7, %cst {dimension_numbers = #tpu.dot_dimension_numbers<[1], [0], [0], [1], [0, 0, 1, 1], [], []>} : vector<128x256xbf16>, vector<256x256xbf16>, vector<128x256xf32> -> vector<128x256xf32>
    %9 = vector.extract_strided_slice %8 {offsets = [0, 0], sizes = [64, 128], strides = [1, 1]} : vector<128x256xf32> to vector<64x128xf32>
    %10 = vector.extract_strided_slice %8 {offsets = [0, 128], sizes = [64, 128], strides = [1, 1]} : vector<128x256xf32> to vector<64x128xf32>
    %11 = vector.extract_strided_slice %8 {offsets = [64, 0], sizes = [64, 128], strides = [1, 1]} : vector<128x256xf32> to vector<64x128xf32>
    %12 = vector.extract_strided_slice %8 {offsets = [64, 128], sizes = [64, 128], strides = [1, 1]} : vector<128x256xf32> to vector<64x128xf32>
    %13 = arith.mulf %9, %9 : vector<64x128xf32>
    %14 = arith.mulf %10, %10 : vector<64x128xf32>
    %15 = arith.addf %13, %14 : vector<64x128xf32>
    %cst_14 = arith.constant 1.000000e-07 : f32
    %16 = vector.broadcast %cst_14 : f32 to vector<64x128xf32>
    %17 = arith.maximumf %15, %16 : vector<64x128xf32>
    %18 = arith.mulf %11, %11 : vector<64x128xf32>
    %19 = arith.mulf %12, %12 : vector<64x128xf32>
    %20 = arith.addf %18, %19 : vector<64x128xf32>
    %cst_15 = arith.constant 1.000000e-07 : f32
    %21 = vector.broadcast %cst_15 : f32 to vector<64x128xf32>
    %22 = arith.maximumf %20, %21 : vector<64x128xf32>
    %23 = tpu.iota {dimensions = array<i32: 0>} : vector<64x1xi32>
    %c64_i32 = arith.constant 64 : i32
    %24 = arith.muli %arg1, %c64_i32 : i32
    %25 = vector.broadcast %24 : i32 to vector<64x1xi32>
    %26 = arith.addi %25, %23 : vector<64x1xi32>
    %c33_i32 = arith.constant 33 : i32
    %27 = vector.broadcast %c33_i32 : i32 to vector<64x1xi32>
    %28 = arith.cmpi slt, %26, %27 : vector<64x1xi32>
    %29 = arith.extui %28 : vector<64x1xi1> to vector<64x1xi32>
    %30 = arith.sitofp %29 : vector<64x1xi32> to vector<64x1xf32>
    %31 = arith.addf %17, %22 : vector<64x128xf32>
    %32 = arith.mulf %17, %22 : vector<64x128xf32>
    %33 = math.sqrt %32 : vector<64x128xf32>
    %cst_16 = arith.constant 2.000000e+00 : f32
    %34 = vector.broadcast %cst_16 : f32 to vector<64x128xf32>
    %35 = arith.mulf %34, %33 : vector<64x128xf32>
    %36 = arith.subf %31, %35 : vector<64x128xf32>
    %37 = vector.broadcast %30 : vector<64x1xf32> to vector<64x128xf32>
    %38 = arith.mulf %36, %37 : vector<64x128xf32>
    %39 = vector.broadcast %30 : vector<64x1xf32> to vector<64x128xf32>
    %40 = arith.mulf %22, %39 : vector<64x128xf32>
    %41 = math.log %17 : vector<64x128xf32>
    %42 = math.log %22 : vector<64x128xf32>
    %43 = arith.subf %41, %42 : vector<64x128xf32>
    %44 = math.absf %43 : vector<64x128xf32>
    %cst_17 = arith.constant 5.000000e-01 : f32
    %45 = vector.broadcast %cst_17 : f32 to vector<64x128xf32>
    %46 = arith.mulf %45, %44 : vector<64x128xf32>
    %47 = vector.broadcast %30 : vector<64x1xf32> to vector<64x128xf32>
    %48 = arith.mulf %46, %47 : vector<64x128xf32>
    %49 = vector.extract_strided_slice %38 {offsets = [0, 0], sizes = [32, 128], strides = [1, 1]} : vector<64x128xf32> to vector<32x128xf32>
    %50 = vector.extract_strided_slice %38 {offsets = [32, 0], sizes = [32, 128], strides = [1, 1]} : vector<64x128xf32> to vector<32x128xf32>
    %51 = arith.addf %49, %50 : vector<32x128xf32>
    %52 = vector.extract_strided_slice %51 {offsets = [0, 0], sizes = [16, 128], strides = [1, 1]} : vector<32x128xf32> to vector<16x128xf32>
    %53 = vector.extract_strided_slice %51 {offsets = [16, 0], sizes = [16, 128], strides = [1, 1]} : vector<32x128xf32> to vector<16x128xf32>
    %54 = arith.addf %52, %53 : vector<16x128xf32>
    %55 = vector.extract_strided_slice %54 {offsets = [0, 0], sizes = [8, 128], strides = [1, 1]} : vector<16x128xf32> to vector<8x128xf32>
    %56 = vector.extract_strided_slice %54 {offsets = [8, 0], sizes = [8, 128], strides = [1, 1]} : vector<16x128xf32> to vector<8x128xf32>
    %57 = arith.addf %55, %56 : vector<8x128xf32>
    %c0_18 = arith.constant 0 : index
    %c0_19 = arith.constant 0 : index
    %c0_20 = arith.constant 0 : index
    %c0_21 = arith.constant 0 : index
    %58 = vector.load %arg5[%c0_18, %c0_19, %c0_20, %c0_21] : memref<1x1x24x128xf32, #tpu.memory_space<vmem>>, vector<1x1x8x128xf32>
    %59 = vector.shape_cast %58 : vector<1x1x8x128xf32> to vector<8x128xf32>
    %60 = vector.shape_cast %57 : vector<8x128xf32> to vector<1x1x8x128xf32>
    tpu.vector_store %arg5[%c0_18, %c0_19, %c0_20, %c0_21], %60 {strides = array<i32>} : memref<1x1x24x128xf32, #tpu.memory_space<vmem>>, vector<1x1x8x128xf32>,
    %61 = vector.extract_strided_slice %40 {offsets = [0, 0], sizes = [32, 128], strides = [1, 1]} : vector<64x128xf32> to vector<32x128xf32>
    %62 = vector.extract_strided_slice %40 {offsets = [32, 0], sizes = [32, 128], strides = [1, 1]} : vector<64x128xf32> to vector<32x128xf32>
    %63 = arith.addf %61, %62 : vector<32x128xf32>
    %64 = vector.extract_strided_slice %63 {offsets = [0, 0], sizes = [16, 128], strides = [1, 1]} : vector<32x128xf32> to vector<16x128xf32>
    %65 = vector.extract_strided_slice %63 {offsets = [16, 0], sizes = [16, 128], strides = [1, 1]} : vector<32x128xf32> to vector<16x128xf32>
    %66 = arith.addf %64, %65 : vector<16x128xf32>
    %67 = vector.extract_strided_slice %66 {offsets = [0, 0], sizes = [8, 128], strides = [1, 1]} : vector<16x128xf32> to vector<8x128xf32>
    %68 = vector.extract_strided_slice %66 {offsets = [8, 0], sizes = [8, 128], strides = [1, 1]} : vector<16x128xf32> to vector<8x128xf32>
    %69 = arith.addf %67, %68 : vector<8x128xf32>
    %c0_22 = arith.constant 0 : index
    %c0_23 = arith.constant 0 : index
    %c8 = arith.constant 8 : index
    %c0_24 = arith.constant 0 : index
    %70 = vector.load %arg5[%c0_22, %c0_23, %c8, %c0_24] : memref<1x1x24x128xf32, #tpu.memory_space<vmem>>, vector<1x1x8x128xf32>
    %71 = vector.shape_cast %70 : vector<1x1x8x128xf32> to vector<8x128xf32>
    %72 = vector.shape_cast %69 : vector<8x128xf32> to vector<1x1x8x128xf32>
    tpu.vector_store %arg5[%c0_22, %c0_23, %c8, %c0_24], %72 {strides = array<i32>} : memref<1x1x24x128xf32, #tpu.memory_space<vmem>>, vector<1x1x8x128xf32>,
    %73 = vector.extract_strided_slice %48 {offsets = [0, 0], sizes = [32, 128], strides = [1, 1]} : vector<64x128xf32> to vector<32x128xf32>
    %74 = vector.extract_strided_slice %48 {offsets = [32, 0], sizes = [32, 128], strides = [1, 1]} : vector<64x128xf32> to vector<32x128xf32>
    %75 = arith.addf %73, %74 : vector<32x128xf32>
    %76 = vector.extract_strided_slice %75 {offsets = [0, 0], sizes = [16, 128], strides = [1, 1]} : vector<32x128xf32> to vector<16x128xf32>
    %77 = vector.extract_strided_slice %75 {offsets = [16, 0], sizes = [16, 128], strides = [1, 1]} : vector<32x128xf32> to vector<16x128xf32>
    %78 = arith.addf %76, %77 : vector<16x128xf32>
    %79 = vector.extract_strided_slice %78 {offsets = [0, 0], sizes = [8, 128], strides = [1, 1]} : vector<16x128xf32> to vector<8x128xf32>
    %80 = vector.extract_strided_slice %78 {offsets = [8, 0], sizes = [8, 128], strides = [1, 1]} : vector<16x128xf32> to vector<8x128xf32>
    %81 = arith.addf %79, %80 : vector<8x128xf32>
    %c0_25 = arith.constant 0 : index
    %c0_26 = arith.constant 0 : index
    %c16 = arith.constant 16 : index
    %c0_27 = arith.constant 0 : index
    %82 = vector.load %arg5[%c0_25, %c0_26, %c16, %c0_27] : memref<1x1x24x128xf32, #tpu.memory_space<vmem>>, vector<1x1x8x128xf32>
    %83 = vector.shape_cast %82 : vector<1x1x8x128xf32> to vector<8x128xf32>
    %84 = vector.shape_cast %81 : vector<8x128xf32> to vector<1x1x8x128xf32>
    tpu.vector_store %arg5[%c0_25, %c0_26, %c16, %c0_27], %84 {strides = array<i32>} : memref<1x1x24x128xf32, #tpu.memory_space<vmem>>, vector<1x1x8x128xf32>,
    return
  }
  func.func @transform_0(%arg0: i32, %arg1: i32) -> (i32, i32, i32, i32) {
    %c0_i32 = arith.constant 0 : i32
    %c0_i32_0 = arith.constant 0 : i32
    %c0_i32_1 = arith.constant 0 : i32
    return %arg0, %arg1, %c0_i32, %c0_i32_0 : i32, i32, i32, i32
  }
  func.func @transform_1(%arg0: i32, %arg1: i32) -> (i32, i32, i32, i32) {
    %c0_i32 = arith.constant 0 : i32
    %c0_i32_0 = arith.constant 0 : i32
    %c0_i32_1 = arith.constant 0 : i32
    return %arg0, %arg1, %c0_i32, %c0_i32_0 : i32, i32, i32, i32
  }
  func.func @transform_2(%arg0: i32, %arg1: i32) -> (i32, i32) {
    %c0_i32 = arith.constant 0 : i32
    %c0_i32_0 = arith.constant 0 : i32
    %c0_i32_1 = arith.constant 0 : i32
    return %c0_i32, %c0_i32_0 : i32, i32
  }
  func.func @transform_3(%arg0: i32, %arg1: i32) -> (i32, i32, i32, i32) {
    %c0_i32 = arith.constant 0 : i32
    %c0_i32_0 = arith.constant 0 : i32
    %c0_i32_1 = arith.constant 0 : i32
    return %arg0, %arg1, %c0_i32, %c0_i32_0 : i32, i32, i32, i32
  }
}

</mosaic_0001>

<llo_original>
// kernel: stft_loss.1
$region0: #{stft_loss.1}
  #allocation0 [shape = 'u32[]', space=smem, size = 0x4, offset = 0x4, fixed_abs, tag = 'smem constant byte address 0x4 - core index']
  #allocation1 [shape = 'u32[144,128]{1,0:T(1,128)}', space=vmem, size = 0x12000, scoped, tag = 'internal scratch']
  #allocation2 [shape = 'bf16[128,256]{1,0:T(8,128)(2,1)}', space=vmem, size = 0x10000, scoped, tag = 'scratch operand']
  %s0 = inlined_call_operand.vmem [shape: bf16[2,1,72,64], index: 0, kind: input, shape index: {}]
  %s1 = inlined_call_operand.vmem [shape: bf16[2,1,72,64], index: 1, kind: input, shape index: {}]
  %s2 = inlined_call_operand.vmem [shape: bf16[256,256], index: 2, kind: input, shape index: {}]
  %s3 = inlined_call_operand.vmem [shape: f32[2,1,24,128], index: 3, kind: output, shape index: {}]
  %s4 = sld [smem:[#allocation0]]
  $region45: #{stft_loss.1} parent=0
    _
  %s6 = ssub.s32 1, %s4
  %s7 = scalar_select 0, %s6, %s4
  loop: start=0, step=1, limit=4
  $region2: #{stft_loss.1} parent=0 // loop_pre_header
    _
  $region3: #{stft_loss.1} parent=0 // loop_header
    %s9 = sphi 0, %s13
    %p10 = scmp.ge.s32.totalorder %s9, 4
    %s16 = sphi 0, %s28
    %s17 = sphi 0, %s24
    %s18 = sphi 0, %s16
    %s19 = sphi 0, %s17
    %s20 = sphi 0, %s18
    %s21 = sphi 0, %s19
    %s33 = sphi 0, %s35
    %s36 = sphi 0, %s33
    %s37 = sphi 0, %s36
    %s53 = sphi 0, %s37
    %s61 = sphi 0, %s63
    %s64 = sphi 0, %s61
    %s65 = sphi 0, %s64
    %s81 = sphi 0, %s65
    %s85 = sphi 0, %s85
    %s87 = sphi 0, %s85
    %s88 = sphi 0, %s87
    %s102 = sphi 0, %s88
    %s110 = sphi 0, %s112
    %s113 = sphi 0, %s110
    %s114 = sphi 0, %s113
    %s130 = sphi 0, %s114
  $region4: #{stft_loss.1} parent=0 // loop_header_branch
    %12 = sbr.rel (%p10) target = $region8
  $region5: #{stft_loss.1} parent=0 // loop_body
    %s14 = ssub.s32 %s9, 1
    %s15 = ssub.s32 %s9, 2
    %s22 = sadd.s32 1, %s17
    %p23 = scmp.ge.s32.totalorder %s22, 1
    %s24 = scalar_select %p23, 0, %s22
    %s25 = sadd.s32 1, %s16
    %s26 = scalar_select %p23, %s25, %s16
    %p27 = scmp.ge.s32.totalorder %s26, 2
    %s28 = scalar_select %p27, 0, %s26
    %s29 = ssub.s32 %s16, %s28
    %s30 = ssub.s32 %s17, %s24
    %s31 = sor.u32 %s29, %s30
    %p32 = scmp.eq.s32.totalorder %s31, 0
    %s34 = sadd.s32 %s33, 1
    %s35 = scalar_select %p32, %s33, %s34
    %p38 = pneg %p32
    %p39 = scmp.eq.s32.totalorder %s9, 1
    %p40 = por %p38, %p39
    %p41 = scmp.ne.s32.totalorder %s33, %s36
    %p42 = scmp.eq.s32.totalorder %s9, 0
    %p43 = por %p41, %p42
    %p44 = scmp.ne.s32.totalorder %s33, %s36
    %p45 = scmp.eq.s32.totalorder %s14, 1
    %p46 = por %p44, %p45
    %p47 = scmp.ne.s32.totalorder %s36, %s37
    %p48 = scmp.eq.s32.totalorder %s14, 0
    %p49 = por %p47, %p48
    %p50 = scmp.ne.s32.totalorder %s36, %s37
    %p51 = scmp.eq.s32.totalorder %s15, 1
    %p52 = por %p50, %p51
    %p54 = scmp.ne.s32.totalorder %s37, %s53
    %p55 = scmp.eq.s32.totalorder %s15, 0
    %p56 = por %p54, %p55
    %s57 = ssub.s32 %s16, %s28
    %s58 = ssub.s32 %s17, %s24
    %s59 = sor.u32 %s57, %s58
    %p60 = scmp.eq.s32.totalorder %s59, 0
    %s62 = sadd.s32 %s61, 1
    %s63 = scalar_select %p60, %s61, %s62
    %p66 = pneg %p60
    %p67 = scmp.eq.s32.totalorder %s9, 1
    %p68 = por %p66, %p67
    %p69 = scmp.ne.s32.totalorder %s61, %s64
    %p70 = scmp.eq.s32.totalorder %s9, 0
    %p71 = por %p69, %p70
    %p72 = scmp.ne.s32.totalorder %s61, %s64
    %p73 = scmp.eq.s32.totalorder %s14, 1
    %p74 = por %p72, %p73
    %p75 = scmp.ne.s32.totalorder %s64, %s65
    %p76 = scmp.eq.s32.totalorder %s14, 0
    %p77 = por %p75, %p76
    %p78 = scmp.ne.s32.totalorder %s64, %s65
    %p79 = scmp.eq.s32.totalorder %s15, 1
    %p80 = por %p78, %p79
    %p82 = scmp.ne.s32.totalorder %s65, %s81
    %p83 = scmp.eq.s32.totalorder %s15, 0
    %p84 = por %p82, %p83
    %s86 = sadd.s32 %s85, 1
    %p89 = scmp.eq.s32.totalorder %s9, 1
    %p90 = scmp.ne.s32.totalorder %s85, %s87
    %p91 = scmp.eq.s32.totalorder %s9, 0
    %p92 = por %p90, %p91
    %p93 = scmp.ne.s32.totalorder %s85, %s87
    %p94 = scmp.eq.s32.totalorder %s14, 1
    %p95 = por %p93, %p94
    %p96 = scmp.ne.s32.totalorder %s87, %s88
    %p97 = scmp.eq.s32.totalorder %s14, 0
    %p98 = por %p96, %p97
    %p99 = scmp.ne.s32.totalorder %s87, %s88
    %p100 = scmp.eq.s32.totalorder %s15, 1
    %p101 = por %p99, %p100
    %p103 = scmp.ne.s32.totalorder %s88, %s102
    %p104 = scmp.eq.s32.totalorder %s15, 0
    %p105 = por %p103, %p104
    %s106 = ssub.s32 %s16, %s28
    %s107 = ssub.s32 %s17, %s24
    %s108 = sor.u32 %s106, %s107
    %p109 = scmp.eq.s32.totalorder %s108, 0
    %s111 = sadd.s32 %s110, 1
    %s112 = scalar_select %p109, %s110, %s111
    %p115 = pneg %p109
    %p116 = scmp.eq.s32.totalorder %s9, 1
    %p117 = por %p115, %p116
    %p118 = scmp.ne.s32.totalorder %s110, %s113
    %p119 = scmp.eq.s32.totalorder %s9, 0
    %p120 = por %p118, %p119
    %p121 = scmp.ne.s32.totalorder %s110, %s113
    %p122 = scmp.eq.s32.totalorder %s14, 1
    %p123 = por %p121, %p122
    %p124 = scmp.ne.s32.totalorder %s113, %s114
    %p125 = scmp.eq.s32.totalorder %s14, 0
    %p126 = por %p124, %p125
    %p127 = scmp.ne.s32.totalorder %s113, %s114
    %p128 = scmp.eq.s32.totalorder %s15, 1
    %p129 = por %p127, %p128
    %p131 = scmp.ne.s32.totalorder %s114, %s130
    %p132 = scmp.eq.s32.totalorder %s15, 0
    %p133 = por %p131, %p132
    %p134 = scmp.le.s32.totalorder 1, %s9
    %p135 = scmp.lt.s32.totalorder %s9, 3
    %p136 = pnand %p134, %p135
    %p137 = pneg %p136
    // Predicated region
    $region9: #{stft_loss.1} parent=5 // pred_check
      _
    $region10: #{stft_loss.1} parent=5 // pred_check_branch
      %139 = sbr.rel (%p136) target = $region12
    $region11: #{stft_loss.1} parent=5 // pred_region
      %s140 = ssub.s32 %s9, 1
      // Predicated region
      $region13: #{stft_loss.1} parent=11 // pred_check
        %p141 = pneg %p98
      $region14: #{stft_loss.1} parent=11 // pred_check_branch
        %143 = sbr.rel (%p141) target = $region16
      $region15: #{stft_loss.1} parent=11 // pred_region
        _
      $region16: #{stft_loss.1} parent=11 // pred_fallthru
        _
    $region12: #{stft_loss.1} parent=5 // pred_fallthru
      _
    %p144 = scmp.lt.s32.totalorder %s9, 2
    // Predicated region
    $region17: #{stft_loss.1} parent=5 // pred_check
      %p145 = pneg %p144
    $region18: #{stft_loss.1} parent=5 // pred_check_branch
      %147 = sbr.rel (%p145) target = $region20
    $region19: #{stft_loss.1} parent=5 // pred_region
      // Predicated region
      $region21: #{stft_loss.1} parent=19 // pred_check
        %p148 = pneg %p43
      $region22: #{stft_loss.1} parent=19 // pred_check_branch
        %150 = sbr.rel (%p148) target = $region24
      $region23: #{stft_loss.1} parent=19 // pred_region
        %p151 = scmp.lt.s32.totalorder %s16, 1
        %s152 = scalar_select %p151, %s16, 1
        %p153 = scmp.lt.s32.totalorder %s17, 0
        %s154 = scalar_select %p153, %s17, 0
        %s155 = smul.addr %s154, 9
        %s156 = smul.addr %s152, 9
        %s157 = sadd.s32 %s155, %s156
        %s158 = smul.addr %s157, 4
        %s159 = scalar_lea.vmem %s0, %s158
      $region24: #{stft_loss.1} parent=19 // pred_fallthru
        _
      // Predicated region
      $region25: #{stft_loss.1} parent=19 // pred_check
        %p160 = pneg %p71
      $region26: #{stft_loss.1} parent=19 // pred_check_branch
        %162 = sbr.rel (%p160) target = $region28
      $region27: #{stft_loss.1} parent=19 // pred_region
        %p163 = scmp.lt.s32.totalorder %s16, 1
        %s164 = scalar_select %p163, %s16, 1
        %p165 = scmp.lt.s32.totalorder %s17, 0
        %s166 = scalar_select %p165, %s17, 0
        %s167 = smul.addr %s166, 9
        %s168 = smul.addr %s164, 9
        %s169 = sadd.s32 %s167, %s168
        %s170 = smul.addr %s169, 4
        %s171 = scalar_lea.vmem %s1, %s170
      $region28: #{stft_loss.1} parent=19 // pred_fallthru
        _
    $region20: #{stft_loss.1} parent=5 // pred_fallthru
      _
    %p172 = scmp.le.s32.totalorder 1, %s9
    %p173 = scmp.lt.s32.totalorder %s9, 3
    %p174 = pnand %p172, %p173
    %p175 = pneg %p174
    // Predicated region
    $region29: #{stft_loss.1} parent=5 // pred_check
      _
    $region30: #{stft_loss.1} parent=5 // pred_check_branch
      %177 = sbr.rel (%p174) target = $region32
    $region31: #{stft_loss.1} parent=5 // pred_region
      %s178 = ssub.s32 %s9, 1
      %p179 = scmp.lt.s32.totalorder %s18, 1
      %s180 = scalar_select %p179, %s18, 1
      %p181 = scmp.lt.s32.totalorder %s19, 0
      %s182 = scalar_select %p181, %s19, 0
      %s183 = smul.addr %s182, 9
      %s184 = smul.addr %s180, 9
      %s185 = sadd.s32 %s183, %s184
      %s186 = smul.addr %s185, 4
      %s187 = scalar_lea.vmem %s0, %s186
      %p188 = pneg %p49
      %p189 = pneg %p46
      %p190 = scmp.lt.s32.totalorder %s18, 1
      %s191 = scalar_select %p190, %s18, 1
      %p192 = scmp.lt.s32.totalorder %s19, 0
      %s193 = scalar_select %p192, %s19, 0
      %s194 = smul.addr %s193, 9
      %s195 = smul.addr %s191, 9
      %s196 = sadd.s32 %s194, %s195
      %s197 = smul.addr %s196, 4
      %s198 = scalar_lea.vmem %s1, %s197
      %p199 = pneg %p77
      %p200 = pneg %p74
      %p201 = pneg %p98
      %p202 = pneg %p95
      %p203 = pneg %p126
      %p204 = pneg %p123
      %p205 = scmp.lt.s32.totalorder %s18, 1
      %s206 = scalar_select %p205, %s18, 1
      %p207 = scmp.lt.s32.totalorder %s19, 0
      %s208 = scalar_select %p207, %s19, 0
      %s209 = smul.addr %s208, 3
      %s210 = smul.addr %s206, 3
      %s211 = sadd.s32 %s209, %s210
      %s212 = smul.addr %s211, 8
      %s213 = scalar_lea.vmem %s3, %s212
      %p214 = scmp.lt.s32.totalorder %s18, 1
      %s215 = scalar_select %p214, %s18, 1
      %p216 = scmp.lt.s32.totalorder %s19, 0
      %s217 = scalar_select %p216, %s19, 0
      %s218 = smul.addr %s217, 9
      %s219 = smul.addr %s215, 9
      %s220 = sadd.s32 %s218, %s219
      %s221 = smul.addr %s220, 4
      %s222 = scalar_lea.vmem %s0, %s221
      %p223 = scmp.lt.s32.totalorder %s18, 1
      %s224 = scalar_select %p223, %s18, 1
      %p225 = scmp.lt.s32.totalorder %s19, 0
      %s226 = scalar_select %p225, %s19, 0
      %s227 = smul.addr %s226, 9
      %s228 = smul.addr %s224, 9
      %s229 = sadd.s32 %s227, %s228
      %s230 = smul.addr %s229, 4
      %s231 = scalar_lea.vmem %s1, %s230
      %p232 = scmp.lt.s32.totalorder %s18, 1
      %s233 = scalar_select %p232, %s18, 1
      %p234 = scmp.lt.s32.totalorder %s19, 0
      %s235 = scalar_select %p234, %s19, 0
      %s236 = smul.addr %s235, 3
      %s237 = smul.addr %s233, 3
      %s238 = sadd.s32 %s236, %s237
      %s239 = smul.addr %s238, 8
      %s240 = scalar_lea.vmem %s3, %s239
      %v241 = vld [vmem:[%s222] sm:$0xf]
      %v242 = vld [vmem:[%s222 + $0x4] sm:$0xf]
      %v243 = vld [vmem:[%s222 + $0x8] sm:$0xf]
      %v244 = vld [vmem:[%s222 + $0xc] sm:$0xf]
      %v245 = vld [vmem:[%s222 + $0x10] sm:$0xf]
      %v246 = vld [vmem:[%s222 + $0x14] sm:$0xf]
      %v247 = vld [vmem:[%s222 + $0x18] sm:$0xf]
      %v248 = vld [vmem:[%s222 + $0x1c] sm:$0xf]
      %v249 = vld [vmem:[%s222 + $0x20] sm:$0xf]
      %v250 = vunpack.c.l.bf16 %v241
      %v251 = vunpack.c.l.bf16 %v242
      %v252 = vunpack.c.l.bf16 %v243
      %v253 = vunpack.c.l.bf16 %v244
      %v254 = vunpack.c.l.bf16 %v245
      %v255 = vunpack.c.l.bf16 %v246
      %v256 = vunpack.c.l.bf16 %v247
      %v257 = vunpack.c.l.bf16 %v248
      %v258 = vunpack.c.l.bf16 %v249
      %v259 = vpack.c.bf16 %v251, %v250
      %v260 = vpack.c.bf16 %v253, %v252
      %v261 = vpack.c.bf16 %v255, %v254
      %v262 = vpack.c.bf16 %v257, %v256
      %v267 = vunpack.c.l.b16 %v259
      %v268 = vunpack.c.h.b16 %v259
      %v269 = vunpack.c.l.b16 %v260
      %v270 = vunpack.c.h.b16 %v260
      %v271 = vunpack.c.l.b16 %v261
      %v272 = vunpack.c.h.b16 %v261
      %v273 = vunpack.c.l.b16 %v262
      %v274 = vunpack.c.h.b16 %v262
      %v275 = vpack.c.b16 %v267, %v267
      %v276 = vpack.c.b16 %v268, %v268
      %v277 = vpack.c.b16 %v269, %v269
      %v278 = vpack.c.b16 %v270, %v270
      %v279 = vpack.c.b16 %v271, %v271
      %v280 = vpack.c.b16 %v272, %v272
      %v281 = vpack.c.b16 %v273, %v273
      %v282 = vpack.c.b16 %v274, %v274
      %vm291 = vcmask 519168
      %292 = vst.msk [vmem:[#allocation2] sm:$0xf] %vm291, %v275
      %293 = vst.msk [vmem:[#allocation2 + $0x8] sm:$0xf] %vm291, %v276
      %294 = vst.msk [vmem:[#allocation2 + $0x10] sm:$0xf] %vm291, %v277
      %295 = vst.msk [vmem:[#allocation2 + $0x18] sm:$0xf] %vm291, %v278
      %296 = vst.msk [vmem:[#allocation2 + $0x20] sm:$0xf] %vm291, %v279
      %297 = vst.msk [vmem:[#allocation2 + $0x28] sm:$0xf] %vm291, %v280
      %298 = vst.msk [vmem:[#allocation2 + $0x30] sm:$0xf] %vm291, %v281
      %299 = vst.msk [vmem:[#allocation2 + $0x38] sm:$0xf] %vm291, %v282
      %v300 = vpack.c.bf16 %v258, %v258
      %v302 = vunpack.c.l.b16 %v300
      %v303 = vpack.c.b16 %v302, %v302
      %vm304 = vsmask.f32 3328
      %vm305 = vsmask.f32 7440
      %vm306 = vmor %vm304, %vm305
      %v308 = vshrl.u32 %v275, 16
      %v310 = vrot.slane %v308, 4
      %v311 = vshll.u32 %v275, 16
      %v313 = vrot.slane %v311, 5
      %v314 = vor.u32 %v310, %v313
      %v315 = vrot.slane %v314, 4
      %v317 = vshll.u32 %v276, 16
      %v319 = vrot.slane %v317, 5
      %v320 = vsel %vm306, %v315, %v319
      %v321 = vshrl.u32 %v276, 16
      %v323 = vrot.slane %v321, 4
      %v324 = vor.u32 %v323, %v319
      %v325 = vrot.slane %v324, 4
      %v327 = vshll.u32 %v277, 16
      %v329 = vrot.slane %v327, 5
      %v330 = vsel %vm306, %v325, %v329
      %v331 = vshrl.u32 %v277, 16
      %v333 = vrot.slane %v331, 4
      %v334 = vor.u32 %v333, %v329
      %v335 = vrot.slane %v334, 4
      %v337 = vshll.u32 %v278, 16
      %v339 = vrot.slane %v337, 5
      %v340 = vsel %vm306, %v335, %v339
      %v341 = vshrl.u32 %v278, 16
      %v343 = vrot.slane %v341, 4
      %v344 = vor.u32 %v343, %v339
      %v345 = vrot.slane %v344, 4
      %v347 = vshll.u32 %v279, 16
      %v349 = vrot.slane %v347, 5
      %v350 = vsel %vm306, %v345, %v349
      %v351 = vshrl.u32 %v279, 16
      %v353 = vrot.slane %v351, 4
      %v354 = vor.u32 %v353, %v349
      %v355 = vrot.slane %v354, 4
      %v357 = vshll.u32 %v280, 16
      %v359 = vrot.slane %v357, 5
      %v360 = vsel %vm306, %v355, %v359
      %v361 = vshrl.u32 %v280, 16
      %v363 = vrot.slane %v361, 4
      %v364 = vor.u32 %v363, %v359
      %v365 = vrot.slane %v364, 4
      %v367 = vshll.u32 %v281, 16
      %v369 = vrot.slane %v367, 5
      %v370 = vsel %vm306, %v365, %v369
      %v371 = vshrl.u32 %v281, 16
      %v373 = vrot.slane %v371, 4
      %v374 = vor.u32 %v373, %v369
      %v375 = vrot.slane %v374, 4
      %v377 = vshll.u32 %v282, 16
      %v379 = vrot.slane %v377, 5
      %v380 = vsel %vm306, %v375, %v379
      %v381 = vshrl.u32 %v282, 16
      %v383 = vrot.slane %v381, 4
      %v384 = vor.u32 %v383, %v379
      %v385 = vrot.slane %v384, 4
      %v387 = vshll.u32 %v303, 16
      %v389 = vrot.slane %v387, 5
      %v390 = vsel %vm306, %v385, %v389
      %391 = vrot.lane.b32.xlu0 %v320, 64
      %v392 = vpop.permute.xlu0 %391
      %393 = vrot.lane.b32.xlu0 %v330, 64
      %v394 = vpop.permute.xlu0 %393
      %395 = vrot.lane.b32.xlu0 %v340, 64
      %v396 = vpop.permute.xlu0 %395
      %397 = vrot.lane.b32.xlu0 %v350, 64
      %v398 = vpop.permute.xlu0 %397
      %399 = vrot.lane.b32.xlu0 %v360, 64
      %v400 = vpop.permute.xlu0 %399
      %401 = vrot.lane.b32.xlu0 %v370, 64
      %v402 = vpop.permute.xlu0 %401
      %403 = vrot.lane.b32.xlu0 %v380, 64
      %v404 = vpop.permute.xlu0 %403
      %405 = vrot.lane.b32.xlu0 %v390, 64
      %v406 = vpop.permute.xlu0 %405
      %vm415 = vcmask 1043968
      %416 = vst.msk [vmem:[#allocation2] sm:$0xf] %vm415, %v392
      %417 = vst.msk [vmem:[#allocation2 + $0x8] sm:$0xf] %vm415, %v394
      %418 = vst.msk [vmem:[#allocation2 + $0x10] sm:$0xf] %vm415, %v396
      %419 = vst.msk [vmem:[#allocation2 + $0x18] sm:$0xf] %vm415, %v398
      %420 = vst.msk [vmem:[#allocation2 + $0x20] sm:$0xf] %vm415, %v400
      %421 = vst.msk [vmem:[#allocation2 + $0x28] sm:$0xf] %vm415, %v402
      %422 = vst.msk [vmem:[#allocation2 + $0x30] sm:$0xf] %vm415, %v404
      %423 = vst.msk [vmem:[#allocation2 + $0x38] sm:$0xf] %vm415, %v406
      %vm424 = vcmask 1042432
      %vm425 = vcmask 1046532
      %vm426 = vmor %vm424, %vm425
      %v427 = vrot.slane %v275, 5
      %v428 = vrot.slane %v427, 4
      %v429 = vrot.slane %v276, 5
      %v430 = vsel %vm426, %v428, %v429
      %v431 = vrot.slane %v429, 4
      %v432 = vrot.slane %v277, 5
      %v433 = vsel %vm426, %v431, %v432
      %v434 = vrot.slane %v432, 4
      %v435 = vrot.slane %v278, 5
      %v436 = vsel %vm426, %v434, %v435
      %v437 = vrot.slane %v435, 4
      %v438 = vrot.slane %v279, 5
      %v439 = vsel %vm426, %v437, %v438
      %v440 = vrot.slane %v438, 4
      %v441 = vrot.slane %v280, 5
      %v442 = vsel %vm426, %v440, %v441
      %v443 = vrot.slane %v441, 4
      %v444 = vrot.slane %v281, 5
      %v445 = vsel %vm426, %v443, %v444
      %v446 = vrot.slane %v444, 4
      %v447 = vrot.slane %v282, 5
      %v448 = vsel %vm426, %v446, %v447
      %v449 = vrot.slane %v447, 4
      %v450 = vrot.slane %v303, 5
      %v451 = vsel %vm426, %v449, %v450
      %460 = vst.msk [vmem:[#allocation2 + $0x4] sm:$0xf] %vm291, %v430
      %461 = vst.msk [vmem:[#allocation2 + $0xc] sm:$0xf] %vm291, %v433
      %462 = vst.msk [vmem:[#allocation2 + $0x14] sm:$0xf] %vm291, %v436
      %463 = vst.msk [vmem:[#allocation2 + $0x1c] sm:$0xf] %vm291, %v439
      %464 = vst.msk [vmem:[#allocation2 + $0x24] sm:$0xf] %vm291, %v442
      %465 = vst.msk [vmem:[#allocation2 + $0x2c] sm:$0xf] %vm291, %v445
      %466 = vst.msk [vmem:[#allocation2 + $0x34] sm:$0xf] %vm291, %v448
      %467 = vst.msk [vmem:[#allocation2 + $0x3c] sm:$0xf] %vm291, %v451
      %vm468 = vsmask.f32 2304
      %vm469 = vsmask.f32 6416
      %vm470 = vmor %vm468, %vm469
      %v471 = vrot.slane %v308, 5
      %v472 = vrot.slane %v311, 6
      %v473 = vor.u32 %v471, %v472
      %v474 = vrot.slane %v473, 4
      %v475 = vrot.slane %v321, 5
      %v476 = vrot.slane %v317, 6
      %v477 = vor.u32 %v475, %v476
      %v478 = vsel %vm470, %v474, %v477
      %v479 = vrot.slane %v477, 4
      %v480 = vrot.slane %v331, 5
      %v481 = vrot.slane %v327, 6
      %v482 = vor.u32 %v480, %v481
      %v483 = vsel %vm470, %v479, %v482
      %v484 = vrot.slane %v482, 4
      %v485 = vrot.slane %v341, 5
      %v486 = vrot.slane %v337, 6
      %v487 = vor.u32 %v485, %v486
      %v488 = vsel %vm470, %v484, %v487
      %v489 = vrot.slane %v487, 4
      %v490 = vrot.slane %v351, 5
      %v491 = vrot.slane %v347, 6
      %v492 = vor.u32 %v490, %v491
      %v493 = vsel %vm470, %v489, %v492
      %v494 = vrot.slane %v492, 4
      %v495 = vrot.slane %v361, 5
      %v496 = vrot.slane %v357, 6
      %v497 = vor.u32 %v495, %v496
      %v498 = vsel %vm470, %v494, %v497
      %v499 = vrot.slane %v497, 4
      %v500 = vrot.slane %v371, 5
      %v501 = vrot.slane %v367, 6
      %v502 = vor.u32 %v500, %v501
      %v503 = vsel %vm470, %v499, %v502
      %v504 = vrot.slane %v502, 4
      %v505 = vrot.slane %v381, 5
      %v506 = vrot.slane %v377, 6
      %v507 = vor.u32 %v505, %v506
      %v508 = vsel %vm470, %v504, %v507
      %v509 = vrot.slane %v507, 4
      %v510 = vshrl.u32 %v303, 16
      %v512 = vrot.slane %v510, 5
      %v513 = vrot.slane %v387, 6
      %v514 = vor.u32 %v512, %v513
      %v515 = vsel %vm470, %v509, %v514
      %516 = vrot.lane.b32.xlu0 %v478, 64
      %v517 = vpop.permute.xlu0 %516
      %518 = vrot.lane.b32.xlu0 %v483, 64
      %v519 = vpop.permute.xlu0 %518
      %520 = vrot.lane.b32.xlu0 %v488, 64
      %v521 = vpop.permute.xlu0 %520
      %522 = vrot.lane.b32.xlu0 %v493, 64
      %v523 = vpop.permute.xlu0 %522
      %524 = vrot.lane.b32.xlu0 %v498, 64
      %v525 = vpop.permute.xlu0 %524
      %526 = vrot.lane.b32.xlu0 %v503, 64
      %v527 = vpop.permute.xlu0 %526
      %528 = vrot.lane.b32.xlu0 %v508, 64
      %v529 = vpop.permute.xlu0 %528
      %530 = vrot.lane.b32.xlu0 %v515, 64
      %v531 = vpop.permute.xlu0 %530
      %540 = vst.msk [vmem:[#allocation2 + $0x4] sm:$0xf] %vm415, %v517
      %541 = vst.msk [vmem:[#allocation2 + $0xc] sm:$0xf] %vm415, %v519
      %542 = vst.msk [vmem:[#allocation2 + $0x14] sm:$0xf] %vm415, %v521
      %543 = vst.msk [vmem:[#allocation2 + $0x1c] sm:$0xf] %vm415, %v523
      %544 = vst.msk [vmem:[#allocation2 + $0x24] sm:$0xf] %vm415, %v525
      %545 = vst.msk [vmem:[#allocation2 + $0x2c] sm:$0xf] %vm415, %v527
      %546 = vst.msk [vmem:[#allocation2 + $0x34] sm:$0xf] %vm415, %v529
      %547 = vst.msk [vmem:[#allocation2 + $0x3c] sm:$0xf] %vm415, %v531
      %v548 = vld [vmem:[%s231] sm:$0xf]
      %v549 = vld [vmem:[%s231 + $0x4] sm:$0xf]
      %v550 = vld [vmem:[%s231 + $0x8] sm:$0xf]
      %v551 = vld [vmem:[%s231 + $0xc] sm:$0xf]
      %v552 = vld [vmem:[%s231 + $0x10] sm:$0xf]
      %v553 = vld [vmem:[%s231 + $0x14] sm:$0xf]
      %v554 = vld [vmem:[%s231 + $0x18] sm:$0xf]
      %v555 = vld [vmem:[%s231 + $0x1c] sm:$0xf]
      %v556 = vld [vmem:[%s231 + $0x20] sm:$0xf]
      %v557 = vunpack.c.l.bf16 %v548
      %v558 = vunpack.c.l.bf16 %v549
      %v559 = vunpack.c.l.bf16 %v550
      %v560 = vunpack.c.l.bf16 %v551
      %v561 = vunpack.c.l.bf16 %v552
      %v562 = vunpack.c.l.bf16 %v553
      %v563 = vunpack.c.l.bf16 %v554
      %v564 = vunpack.c.l.bf16 %v555
      %v565 = vunpack.c.l.bf16 %v556
      %v566 = vpack.c.bf16 %v558, %v557
      %v567 = vpack.c.bf16 %v560, %v559
      %v568 = vpack.c.bf16 %v562, %v561
      %v569 = vpack.c.bf16 %v564, %v563
      %v574 = vunpack.c.l.b16 %v566
      %v575 = vunpack.c.h.b16 %v566
      %v576 = vunpack.c.l.b16 %v567
      %v577 = vunpack.c.h.b16 %v567
      %v578 = vunpack.c.l.b16 %v568
      %v579 = vunpack.c.h.b16 %v568
      %v580 = vunpack.c.l.b16 %v569
      %v581 = vunpack.c.h.b16 %v569
      %v582 = vpack.c.b16 %v574, %v574
      %v583 = vpack.c.b16 %v575, %v575
      %v584 = vpack.c.b16 %v576, %v576
      %v585 = vpack.c.b16 %v577, %v577
      %v586 = vpack.c.b16 %v578, %v578
      %v587 = vpack.c.b16 %v579, %v579
      %v588 = vpack.c.b16 %v580, %v580
      %v589 = vpack.c.b16 %v581, %v581
      %598 = vst.msk [vmem:[#allocation2 + $0x40] sm:$0xf] %vm291, %v582
      %599 = vst.msk [vmem:[#allocation2 + $0x48] sm:$0xf] %vm291, %v583
      %600 = vst.msk [vmem:[#allocation2 + $0x50] sm:$0xf] %vm291, %v584
      %601 = vst.msk [vmem:[#allocation2 + $0x58] sm:$0xf] %vm291, %v585
      %602 = vst.msk [vmem:[#allocation2 + $0x60] sm:$0xf] %vm291, %v586
      %603 = vst.msk [vmem:[#allocation2 + $0x68] sm:$0xf] %vm291, %v587
      %604 = vst.msk [vmem:[#allocation2 + $0x70] sm:$0xf] %vm291, %v588
      %605 = vst.msk [vmem:[#allocation2 + $0x78] sm:$0xf] %vm291, %v589
      %v606 = vpack.c.bf16 %v565, %v565
      %v608 = vunpack.c.l.b16 %v606
      %v609 = vpack.c.b16 %v608, %v608
      %v611 = vshrl.u32 %v582, 16
      %v613 = vrot.slane %v611, 4
      %v614 = vshll.u32 %v582, 16
      %v616 = vrot.slane %v614, 5
      %v617 = vor.u32 %v613, %v616
      %v618 = vrot.slane %v617, 4
      %v620 = vshll.u32 %v583, 16
      %v622 = vrot.slane %v620, 5
      %v623 = vsel %vm306, %v618, %v622
      %v624 = vshrl.u32 %v583, 16
      %v626 = vrot.slane %v624, 4
      %v627 = vor.u32 %v626, %v622
      %v628 = vrot.slane %v627, 4
      %v630 = vshll.u32 %v584, 16
      %v632 = vrot.slane %v630, 5
      %v633 = vsel %vm306, %v628, %v632
      %v634 = vshrl.u32 %v584, 16
      %v636 = vrot.slane %v634, 4
      %v637 = vor.u32 %v636, %v632
      %v638 = vrot.slane %v637, 4
      %v640 = vshll.u32 %v585, 16
      %v642 = vrot.slane %v640, 5
      %v643 = vsel %vm306, %v638, %v642
      %v644 = vshrl.u32 %v585, 16
      %v646 = vrot.slane %v644, 4
      %v647 = vor.u32 %v646, %v642
      %v648 = vrot.slane %v647, 4
      %v650 = vshll.u32 %v586, 16
      %v652 = vrot.slane %v650, 5
      %v653 = vsel %vm306, %v648, %v652
      %v654 = vshrl.u32 %v586, 16
      %v656 = vrot.slane %v654, 4
      %v657 = vor.u32 %v656, %v652
      %v658 = vrot.slane %v657, 4
      %v660 = vshll.u32 %v587, 16
      %v662 = vrot.slane %v660, 5
      %v663 = vsel %vm306, %v658, %v662
      %v664 = vshrl.u32 %v587, 16
      %v666 = vrot.slane %v664, 4
      %v667 = vor.u32 %v666, %v662
      %v668 = vrot.slane %v667, 4
      %v670 = vshll.u32 %v588, 16
      %v672 = vrot.slane %v670, 5
      %v673 = vsel %vm306, %v668, %v672
      %v674 = vshrl.u32 %v588, 16
      %v676 = vrot.slane %v674, 4
      %v677 = vor.u32 %v676, %v672
      %v678 = vrot.slane %v677, 4
      %v680 = vshll.u32 %v589, 16
      %v682 = vrot.slane %v680, 5
      %v683 = vsel %vm306, %v678, %v682
      %v684 = vshrl.u32 %v589, 16
      %v686 = vrot.slane %v684, 4
      %v687 = vor.u32 %v686, %v682
      %v688 = vrot.slane %v687, 4
      %v690 = vshll.u32 %v609, 16
      %v692 = vrot.slane %v690, 5
      %v693 = vsel %vm306, %v688, %v692
      %694 = vrot.lane.b32.xlu0 %v623, 64
      %v695 = vpop.permute.xlu0 %694
      %696 = vrot.lane.b32.xlu0 %v633, 64
      %v697 = vpop.permute.xlu0 %696
      %698 = vrot.lane.b32.xlu0 %v643, 64
      %v699 = vpop.permute.xlu0 %698
      %700 = vrot.lane.b32.xlu0 %v653, 64
      %v701 = vpop.permute.xlu0 %700
      %702 = vrot.lane.b32.xlu0 %v663, 64
      %v703 = vpop.permute.xlu0 %702
      %704 = vrot.lane.b32.xlu0 %v673, 64
      %v705 = vpop.permute.xlu0 %704
      %706 = vrot.lane.b32.xlu0 %v683, 64
      %v707 = vpop.permute.xlu0 %706
      %708 = vrot.lane.b32.xlu0 %v693, 64
      %v709 = vpop.permute.xlu0 %708
      %718 = vst.msk [vmem:[#allocation2 + $0x40] sm:$0xf] %vm415, %v695
      %719 = vst.msk [vmem:[#allocation2 + $0x48] sm:$0xf] %vm415, %v697
      %720 = vst.msk [vmem:[#allocation2 + $0x50] sm:$0xf] %vm415, %v699
      %721 = vst.msk [vmem:[#allocation2 + $0x58] sm:$0xf] %vm415, %v701
      %722 = vst.msk [vmem:[#allocation2 + $0x60] sm:$0xf] %vm415, %v703
      %723 = vst.msk [vmem:[#allocation2 + $0x68] sm:$0xf] %vm415, %v705
      %724 = vst.msk [vmem:[#allocation2 + $0x70] sm:$0xf] %vm415, %v707
      %725 = vst.msk [vmem:[#allocation2 + $0x78] sm:$0xf] %vm415, %v709
      %v726 = vrot.slane %v582, 5
      %v727 = vrot.slane %v726, 4
      %v728 = vrot.slane %v583, 5
      %v729 = vsel %vm426, %v727, %v728
      %v730 = vrot.slane %v728, 4
      %v731 = vrot.slane %v584, 5
      %v732 = vsel %vm426, %v730, %v731
      %v733 = vrot.slane %v731, 4
      %v734 = vrot.slane %v585, 5
      %v735 = vsel %vm426, %v733, %v734
      %v736 = vrot.slane %v734, 4
      %v737 = vrot.slane %v586, 5
      %v738 = vsel %vm426, %v736, %v737
      %v739 = vrot.slane %v737, 4
      %v740 = vrot.slane %v587, 5
      %v741 = vsel %vm426, %v739, %v740
      %v742 = vrot.slane %v740, 4
      %v743 = vrot.slane %v588, 5
      %v744 = vsel %vm426, %v742, %v743
      %v745 = vrot.slane %v743, 4
      %v746 = vrot.slane %v589, 5
      %v747 = vsel %vm426, %v745, %v746
      %v748 = vrot.slane %v746, 4
      %v749 = vrot.slane %v609, 5
      %v750 = vsel %vm426, %v748, %v749
      %759 = vst.msk [vmem:[#allocation2 + $0x44] sm:$0xf] %vm291, %v729
      %760 = vst.msk [vmem:[#allocation2 + $0x4c] sm:$0xf] %vm291, %v732
      %761 = vst.msk [vmem:[#allocation2 + $0x54] sm:$0xf] %vm291, %v735
      %762 = vst.msk [vmem:[#allocation2 + $0x5c] sm:$0xf] %vm291, %v738
      %763 = vst.msk [vmem:[#allocation2 + $0x64] sm:$0xf] %vm291, %v741
      %764 = vst.msk [vmem:[#allocation2 + $0x6c] sm:$0xf] %vm291, %v744
      %765 = vst.msk [vmem:[#allocation2 + $0x74] sm:$0xf] %vm291, %v747
      %766 = vst.msk [vmem:[#allocation2 + $0x7c] sm:$0xf] %vm291, %v750
      %v767 = vrot.slane %v611, 5
      %v768 = vrot.slane %v614, 6
      %v769 = vor.u32 %v767, %v768
      %v770 = vrot.slane %v769, 4
      %v771 = vrot.slane %v624, 5
      %v772 = vrot.slane %v620, 6
      %v773 = vor.u32 %v771, %v772
      %v774 = vsel %vm470, %v770, %v773
      %v775 = vrot.slane %v773, 4
      %v776 = vrot.slane %v634, 5
      %v777 = vrot.slane %v630, 6
      %v778 = vor.u32 %v776, %v777
      %v779 = vsel %vm470, %v775, %v778
      %v780 = vrot.slane %v778, 4
      %v781 = vrot.slane %v644, 5
      %v782 = vrot.slane %v640, 6
      %v783 = vor.u32 %v781, %v782
      %v784 = vsel %vm470, %v780, %v783
      %v785 = vrot.slane %v783, 4
      %v786 = vrot.slane %v654, 5
      %v787 = vrot.slane %v650, 6
      %v788 = vor.u32 %v786, %v787
      %v789 = vsel %vm470, %v785, %v788
      %v790 = vrot.slane %v788, 4
      %v791 = vrot.slane %v664, 5
      %v792 = vrot.slane %v660, 6
      %v793 = vor.u32 %v791, %v792
      %v794 = vsel %vm470, %v790, %v793
      %v795 = vrot.slane %v793, 4
      %v796 = vrot.slane %v674, 5
      %v797 = vrot.slane %v670, 6
      %v798 = vor.u32 %v796, %v797
      %v799 = vsel %vm470, %v795, %v798
      %v800 = vrot.slane %v798, 4
      %v801 = vrot.slane %v684, 5
      %v802 = vrot.slane %v680, 6
      %v803 = vor.u32 %v801, %v802
      %v804 = vsel %vm470, %v800, %v803
      %v805 = vrot.slane %v803, 4
      %v806 = vshrl.u32 %v609, 16
      %v808 = vrot.slane %v806, 5
      %v809 = vrot.slane %v690, 6
      %v810 = vor.u32 %v808, %v809
      %v811 = vsel %vm470, %v805, %v810
      %812 = vrot.lane.b32.xlu0 %v774, 64
      %v813 = vpop.permute.xlu0 %812
      %814 = vrot.lane.b32.xlu0 %v779, 64
      %v815 = vpop.permute.xlu0 %814
      %816 = vrot.lane.b32.xlu0 %v784, 64
      %v817 = vpop.permute.xlu0 %816
      %818 = vrot.lane.b32.xlu0 %v789, 64
      %v819 = vpop.permute.xlu0 %818
      %820 = vrot.lane.b32.xlu0 %v794, 64
      %v821 = vpop.permute.xlu0 %820
      %822 = vrot.lane.b32.xlu0 %v799, 64
      %v823 = vpop.permute.xlu0 %822
      %824 = vrot.lane.b32.xlu0 %v804, 64
      %v825 = vpop.permute.xlu0 %824
      %826 = vrot.lane.b32.xlu0 %v811, 64
      %v827 = vpop.permute.xlu0 %826
      %836 = vst.msk [vmem:[#allocation2 + $0x44] sm:$0xf] %vm415, %v813
      %837 = vst.msk [vmem:[#allocation2 + $0x4c] sm:$0xf] %vm415, %v815
      %838 = vst.msk [vmem:[#allocation2 + $0x54] sm:$0xf] %vm415, %v817
      %839 = vst.msk [vmem:[#allocation2 + $0x5c] sm:$0xf] %vm415, %v819
      %840 = vst.msk [vmem:[#allocation2 + $0x64] sm:$0xf] %vm415, %v821
      %841 = vst.msk [vmem:[#allocation2 + $0x6c] sm:$0xf] %vm415, %v823
      %842 = vst.msk [vmem:[#allocation2 + $0x74] sm:$0xf] %vm415, %v825
      %843 = vst.msk [vmem:[#allocation2 + $0x7c] sm:$0xf] %vm415, %v827
      %v844 = vld [vmem:[#allocation2] sm:$0xff]
      %v845 = vld [vmem:[#allocation2 + $0x8] sm:$0xff]
      %v846 = vld [vmem:[#allocation2 + $0x10] sm:$0xff]
      %v847 = vld [vmem:[#allocation2 + $0x18] sm:$0xff]
      %v848 = vld [vmem:[#allocation2 + $0x20] sm:$0xff]
      %v849 = vld [vmem:[#allocation2 + $0x28] sm:$0xff]
      %v850 = vld [vmem:[#allocation2 + $0x30] sm:$0xff]
      %v851 = vld [vmem:[#allocation2 + $0x38] sm:$0xff]
      %v852 = vld [vmem:[#allocation2 + $0x40] sm:$0xff]
      %v853 = vld [vmem:[#allocation2 + $0x48] sm:$0xff]
      %v854 = vld [vmem:[#allocation2 + $0x50] sm:$0xff]
      %v855 = vld [vmem:[#allocation2 + $0x58] sm:$0xff]
      %v856 = vld [vmem:[#allocation2 + $0x60] sm:$0xff]
      %v857 = vld [vmem:[#allocation2 + $0x68] sm:$0xff]
      %v858 = vld [vmem:[#allocation2 + $0x70] sm:$0xff]
      %v859 = vld [vmem:[#allocation2 + $0x78] sm:$0xff]
      %v860 = vld [vmem:[%s2] sm:$0xff]
      %v861 = vld [vmem:[%s2 + $0x8] sm:$0xff]
      %v862 = vld [vmem:[%s2 + $0x10] sm:$0xff]
      %v863 = vld [vmem:[%s2 + $0x18] sm:$0xff]
      %v864 = vld [vmem:[%s2 + $0x20] sm:$0xff]
      %v865 = vld [vmem:[%s2 + $0x28] sm:$0xff]
      %v866 = vld [vmem:[%s2 + $0x30] sm:$0xff]
      %v867 = vld [vmem:[%s2 + $0x38] sm:$0xff]
      %v868 = vld [vmem:[%s2 + $0x40] sm:$0xff]
      %v869 = vld [vmem:[%s2 + $0x48] sm:$0xff]
      %v870 = vld [vmem:[%s2 + $0x50] sm:$0xff]
      %v871 = vld [vmem:[%s2 + $0x58] sm:$0xff]
      %v872 = vld [vmem:[%s2 + $0x60] sm:$0xff]
      %v873 = vld [vmem:[%s2 + $0x68] sm:$0xff]
      %v874 = vld [vmem:[%s2 + $0x70] sm:$0xff]
      %v875 = vld [vmem:[%s2 + $0x78] sm:$0xff]
      %v876 = vld [vmem:[%s2 + $0x80] sm:$0xff]
      %v877 = vld [vmem:[%s2 + $0x88] sm:$0xff]
      %v878 = vld [vmem:[%s2 + $0x90] sm:$0xff]
      %v879 = vld [vmem:[%s2 + $0x98] sm:$0xff]
      %v880 = vld [vmem:[%s2 + $0xa0] sm:$0xff]
      %v881 = vld [vmem:[%s2 + $0xa8] sm:$0xff]
      %v882 = vld [vmem:[%s2 + $0xb0] sm:$0xff]
      %v883 = vld [vmem:[%s2 + $0xb8] sm:$0xff]
      %v884 = vld [vmem:[%s2 + $0xc0] sm:$0xff]
      %v885 = vld [vmem:[%s2 + $0xc8] sm:$0xff]
      %v886 = vld [vmem:[%s2 + $0xd0] sm:$0xff]
      %v887 = vld [vmem:[%s2 + $0xd8] sm:$0xff]
      %v888 = vld [vmem:[%s2 + $0xe0] sm:$0xff]
      %v889 = vld [vmem:[%s2 + $0xe8] sm:$0xff]
      %v890 = vld [vmem:[%s2 + $0xf0] sm:$0xff]
      %v891 = vld [vmem:[%s2 + $0xf8] sm:$0xff]
      %v908 = vunpack.c.l.b16 %v844
      %v909 = vunpack.c.h.b16 %v844
      %v910 = vunpack.c.l.b16 %v845
      %v911 = vunpack.c.h.b16 %v845
      %v912 = vunpack.c.l.b16 %v846
      %v913 = vunpack.c.h.b16 %v846
      %v914 = vunpack.c.l.b16 %v847
      %v915 = vunpack.c.h.b16 %v847
      %v916 = vunpack.c.l.b16 %v848
      %v917 = vunpack.c.h.b16 %v848
      %v918 = vunpack.c.l.b16 %v849
      %v919 = vunpack.c.h.b16 %v849
      %v920 = vunpack.c.l.b16 %v850
      %v921 = vunpack.c.h.b16 %v850
      %v922 = vunpack.c.l.b16 %v851
      %v923 = vunpack.c.h.b16 %v851
      %v924 = vunpack.c.l.b16 %v852
      %v925 = vunpack.c.h.b16 %v852
      %v926 = vunpack.c.l.b16 %v853
      %v927 = vunpack.c.h.b16 %v853
      %v928 = vunpack.c.l.b16 %v854
      %v929 = vunpack.c.h.b16 %v854
      %v930 = vunpack.c.l.b16 %v855
      %v931 = vunpack.c.h.b16 %v855
      %v932 = vunpack.c.l.b16 %v856
      %v933 = vunpack.c.h.b16 %v856
      %v934 = vunpack.c.l.b16 %v857
      %v935 = vunpack.c.h.b16 %v857
      %v936 = vunpack.c.l.b16 %v858
      %v937 = vunpack.c.h.b16 %v858
      %v938 = vunpack.c.l.b16 %v859
      %v939 = vunpack.c.h.b16 %v859
      %v940 = vpack.c.b16 %v910, %v908
      %v941 = vpack.c.b16 %v911, %v909
      %v942 = vpack.c.b16 %v914, %v912
      %v943 = vpack.c.b16 %v915, %v913
      %v944 = vpack.c.b16 %v918, %v916
      %v945 = vpack.c.b16 %v919, %v917
      %v946 = vpack.c.b16 %v922, %v920
      %v947 = vpack.c.b16 %v923, %v921
      %v948 = vpack.c.b16 %v926, %v924
      %v949 = vpack.c.b16 %v927, %v925
      %v950 = vpack.c.b16 %v930, %v928
      %v951 = vpack.c.b16 %v931, %v929
      %v952 = vpack.c.b16 %v934, %v932
      %v953 = vpack.c.b16 %v935, %v933
      %v954 = vpack.c.b16 %v938, %v936
      %v955 = vpack.c.b16 %v939, %v937
      %v1004 = vunpack.c.l.b16 %v860
      %v1005 = vunpack.c.h.b16 %v860
      %v1006 = vunpack.c.l.b16 %v861
      %v1007 = vunpack.c.h.b16 %v861
      %v1008 = vunpack.c.l.b16 %v862
      %v1009 = vunpack.c.h.b16 %v862
      %v1010 = vunpack.c.l.b16 %v863
      %v1011 = vunpack.c.h.b16 %v863
      %v1012 = vunpack.c.l.b16 %v864
      %v1013 = vunpack.c.h.b16 %v864
      %v1014 = vunpack.c.l.b16 %v865
      %v1015 = vunpack.c.h.b16 %v865
      %v1016 = vunpack.c.l.b16 %v866
      %v1017 = vunpack.c.h.b16 %v866
      %v1018 = vunpack.c.l.b16 %v867
      %v1019 = vunpack.c.h.b16 %v867
      %v1020 = vunpack.c.l.b16 %v868
      %v1021 = vunpack.c.h.b16 %v868
      %v1022 = vunpack.c.l.b16 %v869
      %v1023 = vunpack.c.h.b16 %v869
      %v1024 = vunpack.c.l.b16 %v870
      %v1025 = vunpack.c.h.b16 %v870
      %v1026 = vunpack.c.l.b16 %v871
      %v1027 = vunpack.c.h.b16 %v871
      %v1028 = vunpack.c.l.b16 %v872
      %v1029 = vunpack.c.h.b16 %v872
      %v1030 = vunpack.c.l.b16 %v873
      %v1031 = vunpack.c.h.b16 %v873
      %v1032 = vunpack.c.l.b16 %v874
      %v1033 = vunpack.c.h.b16 %v874
      %v1034 = vunpack.c.l.b16 %v875
      %v1035 = vunpack.c.h.b16 %v875
      %v1036 = vunpack.c.l.b16 %v876
      %v1037 = vunpack.c.h.b16 %v876
      %v1038 = vunpack.c.l.b16 %v877
      %v1039 = vunpack.c.h.b16 %v877
      %v1040 = vunpack.c.l.b16 %v878
      %v1041 = vunpack.c.h.b16 %v878
      %v1042 = vunpack.c.l.b16 %v879
      %v1043 = vunpack.c.h.b16 %v879
      %v1044 = vunpack.c.l.b16 %v880
      %v1045 = vunpack.c.h.b16 %v880
      %v1046 = vunpack.c.l.b16 %v881
      %v1047 = vunpack.c.h.b16 %v881
      %v1048 = vunpack.c.l.b16 %v882
      %v1049 = vunpack.c.h.b16 %v882
      %v1050 = vunpack.c.l.b16 %v883
      %v1051 = vunpack.c.h.b16 %v883
      %v1052 = vunpack.c.l.b16 %v884
      %v1053 = vunpack.c.h.b16 %v884
      %v1054 = vunpack.c.l.b16 %v885
      %v1055 = vunpack.c.h.b16 %v885
      %v1056 = vunpack.c.l.b16 %v886
      %v1057 = vunpack.c.h.b16 %v886
      %v1058 = vunpack.c.l.b16 %v887
      %v1059 = vunpack.c.h.b16 %v887
      %v1060 = vunpack.c.l.b16 %v888
      %v1061 = vunpack.c.h.b16 %v888
      %v1062 = vunpack.c.l.b16 %v889
      %v1063 = vunpack.c.h.b16 %v889
      %v1064 = vunpack.c.l.b16 %v890
      %v1065 = vunpack.c.h.b16 %v890
      %v1066 = vunpack.c.l.b16 %v891
      %v1067 = vunpack.c.h.b16 %v891
      %v1068 = vpack.c.b16 %v1006, %v1004
      %v1069 = vpack.c.b16 %v1007, %v1005
      %v1070 = vpack.c.b16 %v1010, %v1008
      %v1071 = vpack.c.b16 %v1011, %v1009
      %v1072 = vpack.c.b16 %v1014, %v1012
      %v1073 = vpack.c.b16 %v1015, %v1013
      %v1074 = vpack.c.b16 %v1018, %v1016
      %v1075 = vpack.c.b16 %v1019, %v1017
      %v1076 = vpack.c.b16 %v1022, %v1020
      %v1077 = vpack.c.b16 %v1023, %v1021
      %v1078 = vpack.c.b16 %v1026, %v1024
      %v1079 = vpack.c.b16 %v1027, %v1025
      %v1080 = vpack.c.b16 %v1030, %v1028
      %v1081 = vpack.c.b16 %v1031, %v1029
      %v1082 = vpack.c.b16 %v1034, %v1032
      %v1083 = vpack.c.b16 %v1035, %v1033
      %v1084 = vpack.c.b16 %v1038, %v1036
      %v1085 = vpack.c.b16 %v1039, %v1037
      %v1086 = vpack.c.b16 %v1042, %v1040
      %v1087 = vpack.c.b16 %v1043, %v1041
      %v1088 = vpack.c.b16 %v1046, %v1044
      %v1089 = vpack.c.b16 %v1047, %v1045
      %v1090 = vpack.c.b16 %v1050, %v1048
      %v1091 = vpack.c.b16 %v1051, %v1049
      %v1092 = vpack.c.b16 %v1054, %v1052
      %v1093 = vpack.c.b16 %v1055, %v1053
      %v1094 = vpack.c.b16 %v1058, %v1056
      %v1095 = vpack.c.b16 %v1059, %v1057
      %v1096 = vpack.c.b16 %v1062, %v1060
      %v1097 = vpack.c.b16 %v1063, %v1061
      %v1098 = vpack.c.b16 %v1066, %v1064
      %v1099 = vpack.c.b16 %v1067, %v1065
      %1132 = vmatprep.subr.bf16.mxu0 %v1083
      %1133 = vmatpush1.bf16.msra.mxu0 %v1082
      %1134 = vmatprep.subr.bf16.mxu0 %v1081
      %1135 = vmatpush1.bf16.msra.mxu0 %v1080
      %1136 = vmatprep.subr.bf16.mxu0 %v1079
      %1137 = vmatpush1.bf16.msra.mxu0 %v1078
      %1138 = vmatprep.subr.bf16.mxu0 %v1077
      %1139 = vmatpush1.bf16.msra.mxu0 %v1076
      %1140 = vmatprep.subr.bf16.mxu0 %v1075
      %1141 = vmatpush1.bf16.msra.mxu0 %v1074
      %1142 = vmatprep.subr.bf16.mxu0 %v1073
      %1143 = vmatpush1.bf16.msra.mxu0 %v1072
      %1144 = vmatprep.subr.bf16.mxu0 %v1071
      %1145 = vmatpush1.bf16.msra.mxu0 %v1070
      %1146 = vmatprep.subr.bf16.mxu0 %v1069
      %1147 = vmatpush1.bf16.msra.mxu0 %v1068
      %1148 = vmatprep.subr.bf16.mxu0 %v1099
      %1149 = vmatpush2.bf16.msra.mxu0 %v1098
      %1150 = vmatprep.subr.bf16.mxu0 %v1097
      %1151 = vmatpush2.bf16.msra.mxu0 %v1096
      %1152 = vmatprep.subr.bf16.mxu0 %v1095
      %1153 = vmatpush2.bf16.msra.mxu0 %v1094
      %1154 = vmatprep.subr.bf16.mxu0 %v1093
      %1155 = vmatpush2.bf16.msra.mxu0 %v1092
      %1156 = vmatprep.subr.bf16.mxu0 %v1091
      %1157 = vmatpush2.bf16.msra.mxu0 %v1090
      %1158 = vmatprep.subr.bf16.mxu0 %v1089
      %1159 = vmatpush2.bf16.msra.mxu0 %v1088
      %1160 = vmatprep.subr.bf16.mxu0 %v1087
      %1161 = vmatpush2.bf16.msra.mxu0 %v1086
      %1162 = vmatprep.subr.bf16.mxu0 %v1085
      %1163 = vmatpush2.bf16.msra.mxu0 %v1084
      %1164 = vmatprep.mubr.bf16.mxu0 %v941
      %1165 = vmatmul.mubr.bf16.gmra.mxu0 %v940
      %v1166 = vpop.f32.mrf.mxu0
      %v1167 = vadd.f32 0.0, %v1166
      %v1168 = vpop.f32.mrf.mxu0
      %v1169 = vadd.f32 0.0, %v1168
      %v1170 = vpop.f32.mrf.mxu0
      %v1171 = vadd.f32 0.0, %v1170
      %v1172 = vpop.f32.mrf.mxu0
      %v1173 = vadd.f32 0.0, %v1172
      %1174 = vmatprep.mubr.bf16.mxu0 %v943
      %1175 = vmatmul.mubr.bf16.gmra.mxu0 %v942
      %v1176 = vpop.f32.mrf.mxu0
      %v1177 = vadd.f32 0.0, %v1176
      %v1178 = vpop.f32.mrf.mxu0
      %v1179 = vadd.f32 0.0, %v1178
      %v1180 = vpop.f32.mrf.mxu0
      %v1181 = vadd.f32 0.0, %v1180
      %v1182 = vpop.f32.mrf.mxu0
      %v1183 = vadd.f32 0.0, %v1182
      %1184 = vmatprep.mubr.bf16.mxu0 %v945
      %1185 = vmatmul.mubr.bf16.gmra.mxu0 %v944
      %v1186 = vpop.f32.mrf.mxu0
      %v1187 = vadd.f32 0.0, %v1186
      %v1188 = vpop.f32.mrf.mxu0
      %v1189 = vadd.f32 0.0, %v1188
      %v1190 = vpop.f32.mrf.mxu0
      %v1191 = vadd.f32 0.0, %v1190
      %v1192 = vpop.f32.mrf.mxu0
      %v1193 = vadd.f32 0.0, %v1192
      %1194 = vmatprep.mubr.bf16.mxu0 %v947
      %1195 = vmatmul.mubr.bf16.gmra.mxu0 %v946
      %v1196 = vpop.f32.mrf.mxu0
      %v1197 = vadd.f32 0.0, %v1196
      %v1198 = vpop.f32.mrf.mxu0
      %v1199 = vadd.f32 0.0, %v1198
      %v1200 = vpop.f32.mrf.mxu0
      %v1201 = vadd.f32 0.0, %v1200
      %v1202 = vpop.f32.mrf.mxu0
      %v1203 = vadd.f32 0.0, %v1202
      %1204 = vmatprep.mubr.bf16.mxu0 %v949
      %1205 = vmatmul.mubr.bf16.gmra.mxu0 %v948
      %v1206 = vpop.f32.mrf.mxu0
      %v1207 = vadd.f32 0.0, %v1206
      %v1208 = vpop.f32.mrf.mxu0
      %v1209 = vadd.f32 0.0, %v1208
      %v1210 = vpop.f32.mrf.mxu0
      %v1211 = vadd.f32 0.0, %v1210
      %v1212 = vpop.f32.mrf.mxu0
      %v1213 = vadd.f32 0.0, %v1212
      %1214 = vmatprep.mubr.bf16.mxu0 %v951
      %1215 = vmatmul.mubr.bf16.gmra.mxu0 %v950
      %v1216 = vpop.f32.mrf.mxu0
      %v1217 = vadd.f32 0.0, %v1216
      %v1218 = vpop.f32.mrf.mxu0
      %v1219 = vadd.f32 0.0, %v1218
      %v1220 = vpop.f32.mrf.mxu0
      %v1221 = vadd.f32 0.0, %v1220
      %v1222 = vpop.f32.mrf.mxu0
      %v1223 = vadd.f32 0.0, %v1222
      %1224 = vmatprep.mubr.bf16.mxu0 %v953
      %1225 = vmatmul.mubr.bf16.gmra.mxu0 %v952
      %v1226 = vpop.f32.mrf.mxu0
      %v1227 = vadd.f32 0.0, %v1226
      %v1228 = vpop.f32.mrf.mxu0
      %v1229 = vadd.f32 0.0, %v1228
      %v1230 = vpop.f32.mrf.mxu0
      %v1231 = vadd.f32 0.0, %v1230
      %v1232 = vpop.f32.mrf.mxu0
      %v1233 = vadd.f32 0.0, %v1232
      %1234 = vmatprep.mubr.bf16.mxu0 %v955
      %1235 = vmatmul.mubr.bf16.gmra.mxu0 %v954
      %v1236 = vpop.f32.mrf.mxu0
      %v1237 = vadd.f32 0.0, %v1236
      %v1238 = vpop.f32.mrf.mxu0
      %v1239 = vadd.f32 0.0, %v1238
      %v1240 = vpop.f32.mrf.mxu0
      %v1241 = vadd.f32 0.0, %v1240
      %v1242 = vpop.f32.mrf.mxu0
      %v1243 = vadd.f32 0.0, %v1242
      %1244 = vdwg.mxu0
      %v1245 = vmul.f32 %v1167, %v1167
      %v1246 = vmul.f32 %v1171, %v1171
      %v1247 = vmul.f32 %v1177, %v1177
      %v1248 = vmul.f32 %v1181, %v1181
      %v1249 = vmul.f32 %v1187, %v1187
      %v1250 = vmul.f32 %v1191, %v1191
      %v1251 = vmul.f32 %v1197, %v1197
      %v1252 = vmul.f32 %v1201, %v1201
      %v1253 = vmul.f32 %v1169, %v1169
      %v1254 = vmul.f32 %v1173, %v1173
      %v1255 = vmul.f32 %v1179, %v1179
      %v1256 = vmul.f32 %v1183, %v1183
      %v1257 = vmul.f32 %v1189, %v1189
      %v1258 = vmul.f32 %v1193, %v1193
      %v1259 = vmul.f32 %v1199, %v1199
      %v1260 = vmul.f32 %v1203, %v1203
      %v1261 = vadd.f32 %v1245, %v1253
      %v1262 = vadd.f32 %v1246, %v1254
      %v1263 = vadd.f32 %v1247, %v1255
      %v1264 = vadd.f32 %v1248, %v1256
      %v1265 = vadd.f32 %v1249, %v1257
      %v1266 = vadd.f32 %v1250, %v1258
      %v1267 = vadd.f32 %v1251, %v1259
      %v1268 = vadd.f32 %v1252, %v1260
      %v1269 = vmax.f32 %v1261, 1e-07
      %v1270 = vmax.f32 %v1262, 1e-07
      %v1271 = vmax.f32 %v1263, 1e-07
      %v1272 = vmax.f32 %v1264, 1e-07
      %v1273 = vmax.f32 %v1265, 1e-07
      %v1274 = vmax.f32 %v1266, 1e-07
      %v1275 = vmax.f32 %v1267, 1e-07
      %v1276 = vmax.f32 %v1268, 1e-07
      %v1277 = vmul.f32 %v1207, %v1207
      %v1278 = vmul.f32 %v1211, %v1211
      %v1279 = vmul.f32 %v1217, %v1217
      %v1280 = vmul.f32 %v1221, %v1221
      %v1281 = vmul.f32 %v1227, %v1227
      %v1282 = vmul.f32 %v1231, %v1231
      %v1283 = vmul.f32 %v1237, %v1237
      %v1284 = vmul.f32 %v1241, %v1241
      %v1285 = vmul.f32 %v1209, %v1209
      %v1286 = vmul.f32 %v1213, %v1213
      %v1287 = vmul.f32 %v1219, %v1219
      %v1288 = vmul.f32 %v1223, %v1223
      %v1289 = vmul.f32 %v1229, %v1229
      %v1290 = vmul.f32 %v1233, %v1233
      %v1291 = vmul.f32 %v1239, %v1239
      %v1292 = vmul.f32 %v1243, %v1243
      %v1293 = vadd.f32 %v1277, %v1285
      %v1294 = vadd.f32 %v1278, %v1286
      %v1295 = vadd.f32 %v1279, %v1287
      %v1296 = vadd.f32 %v1280, %v1288
      %v1297 = vadd.f32 %v1281, %v1289
      %v1298 = vadd.f32 %v1282, %v1290
      %v1299 = vadd.f32 %v1283, %v1291
      %v1300 = vadd.f32 %v1284, %v1292
      %v1301 = vmax.f32 %v1293, 1e-07
      %v1302 = vmax.f32 %v1294, 1e-07
      %v1303 = vmax.f32 %v1295, 1e-07
      %v1304 = vmax.f32 %v1296, 1e-07
      %v1305 = vmax.f32 %v1297, 1e-07
      %v1306 = vmax.f32 %v1298, 1e-07
      %v1307 = vmax.f32 %v1299, 1e-07
      %v1308 = vmax.f32 %v1300, 1e-07
      %v1309 = vlaneseq
      %v1310 = vshrl.u32 %v1309, 7
      %v1311 = vadd.s32 %v1310, 8
      %v1312 = vadd.s32 %v1310, 16
      %v1313 = vadd.s32 %v1310, 24
      %v1314 = vadd.s32 %v1310, 32
      %v1315 = vadd.s32 %v1310, 40
      %v1316 = vadd.s32 %v1310, 48
      %v1317 = vadd.s32 %v1310, 56
      %s1318 = smul.u32 %s19, 64
      %v1319 = vstv %s1318
      %v1320 = vadd.s32 %v1319, %v1310
      %v1321 = vadd.s32 %v1319, %v1311
      %v1322 = vadd.s32 %v1319, %v1312
      %v1323 = vadd.s32 %v1319, %v1313
      %v1324 = vadd.s32 %v1319, %v1314
      %v1325 = vadd.s32 %v1319, %v1315
      %v1326 = vadd.s32 %v1319, %v1316
      %v1327 = vadd.s32 %v1319, %v1317
      %vm1328 = vcmp.lt.s32.totalorder %v1320, 33
      %vm1329 = vcmp.lt.s32.totalorder %v1321, 33
      %vm1330 = vcmp.lt.s32.totalorder %v1322, 33
      %vm1331 = vcmp.lt.s32.totalorder %v1323, 33
      %vm1332 = vcmp.lt.s32.totalorder %v1324, 33
      %vm1333 = vcmp.lt.s32.totalorder %v1325, 33
      %vm1334 = vcmp.lt.s32.totalorder %v1326, 33
      %vm1335 = vcmp.lt.s32.totalorder %v1327, 33
      %v1336 = vsel %vm1328, 1, 0
      %v1337 = vsel %vm1329, 1, 0
      %v1338 = vsel %vm1330, 1, 0
      %v1339 = vsel %vm1331, 1, 0
      %v1340 = vsel %vm1332, 1, 0
      %v1341 = vsel %vm1333, 1, 0
      %v1342 = vsel %vm1334, 1, 0
      %v1343 = vsel %vm1335, 1, 0
      %v1344 = vcvt.s32.f32 %v1336
      %v1345 = vcvt.s32.f32 %v1337
      %v1346 = vcvt.s32.f32 %v1338
      %v1347 = vcvt.s32.f32 %v1339
      %v1348 = vcvt.s32.f32 %v1340
      %v1349 = vcvt.s32.f32 %v1341
      %v1350 = vcvt.s32.f32 %v1342
      %v1351 = vcvt.s32.f32 %v1343
      %v1352 = vadd.f32 %v1269, %v1301
      %v1353 = vadd.f32 %v1270, %v1302
      %v1354 = vadd.f32 %v1271, %v1303
      %v1355 = vadd.f32 %v1272, %v1304
      %v1356 = vadd.f32 %v1273, %v1305
      %v1357 = vadd.f32 %v1274, %v1306
      %v1358 = vadd.f32 %v1275, %v1307
      %v1359 = vadd.f32 %v1276, %v1308
      %v1360 = vmul.f32 %v1269, %v1301
      %v1361 = vmul.f32 %v1270, %v1302
      %v1362 = vmul.f32 %v1271, %v1303
      %v1363 = vmul.f32 %v1272, %v1304
      %v1364 = vmul.f32 %v1273, %v1305
      %v1365 = vmul.f32 %v1274, %v1306
      %v1366 = vmul.f32 %v1275, %v1307
      %v1367 = vmul.f32 %v1276, %v1308
      %v1368 = vrsqrt.pop %v1360
      %v1369 = vmul.f32 %v1360, %v1368
      %vm1370 = vcmp.eq.f32.partialorder %v1360, inf
      %v1371 = vsel %vm1370, %v1360, %v1369
      %vm1372 = vcmp.eq.f32.partialorder %v1360, 0.0
      %v1373 = vand.u32 %v1360, 2147483648
      %v1374 = vsel %vm1372, %v1373, %v1371
      %v1375 = vrsqrt.pop %v1361
      %v1376 = vmul.f32 %v1361, %v1375
      %vm1377 = vcmp.eq.f32.partialorder %v1361, inf
      %v1378 = vsel %vm1377, %v1361, %v1376
      %vm1379 = vcmp.eq.f32.partialorder %v1361, 0.0
      %v1380 = vand.u32 %v1361, 2147483648
      %v1381 = vsel %vm1379, %v1380, %v1378
      %v1382 = vrsqrt.pop %v1362
      %v1383 = vmul.f32 %v1362, %v1382
      %vm1384 = vcmp.eq.f32.partialorder %v1362, inf
      %v1385 = vsel %vm1384, %v1362, %v1383
      %vm1386 = vcmp.eq.f32.partialorder %v1362, 0.0
      %v1387 = vand.u32 %v1362, 2147483648
      %v1388 = vsel %vm1386, %v1387, %v1385
      %v1389 = vrsqrt.pop %v1363
      %v1390 = vmul.f32 %v1363, %v1389
      %vm1391 = vcmp.eq.f32.partialorder %v1363, inf
      %v1392 = vsel %vm1391, %v1363, %v1390
      %vm1393 = vcmp.eq.f32.partialorder %v1363, 0.0
      %v1394 = vand.u32 %v1363, 2147483648
      %v1395 = vsel %vm1393, %v1394, %v1392
      %v1396 = vrsqrt.pop %v1364
      %v1397 = vmul.f32 %v1364, %v1396
      %vm1398 = vcmp.eq.f32.partialorder %v1364, inf
      %v1399 = vsel %vm1398, %v1364, %v1397
      %vm1400 = vcmp.eq.f32.partialorder %v1364, 0.0
      %v1401 = vand.u32 %v1364, 2147483648
      %v1402 = vsel %vm1400, %v1401, %v1399
      %v1403 = vrsqrt.pop %v1365
      %v1404 = vmul.f32 %v1365, %v1403
      %vm1405 = vcmp.eq.f32.partialorder %v1365, inf
      %v1406 = vsel %vm1405, %v1365, %v1404
      %vm1407 = vcmp.eq.f32.partialorder %v1365, 0.0
      %v1408 = vand.u32 %v1365, 2147483648
      %v1409 = vsel %vm1407, %v1408, %v1406
      %v1410 = vrsqrt.pop %v1366
      %v1411 = vmul.f32 %v1366, %v1410
      %vm1412 = vcmp.eq.f32.partialorder %v1366, inf
      %v1413 = vsel %vm1412, %v1366, %v1411
      %vm1414 = vcmp.eq.f32.partialorder %v1366, 0.0
      %v1415 = vand.u32 %v1366, 2147483648
      %v1416 = vsel %vm1414, %v1415, %v1413
      %v1417 = vrsqrt.pop %v1367
      %v1418 = vmul.f32 %v1367, %v1417
      %vm1419 = vcmp.eq.f32.partialorder %v1367, inf
      %v1420 = vsel %vm1419, %v1367, %v1418
      %vm1421 = vcmp.eq.f32.partialorder %v1367, 0.0
      %v1422 = vand.u32 %v1367, 2147483648
      %v1423 = vsel %vm1421, %v1422, %v1420
      %v1424 = vmul.f32 %v1374, 2.0
      %v1425 = vmul.f32 %v1381, 2.0
      %v1426 = vmul.f32 %v1388, 2.0
      %v1427 = vmul.f32 %v1395, 2.0
      %v1428 = vmul.f32 %v1402, 2.0
      %v1429 = vmul.f32 %v1409, 2.0
      %v1430 = vmul.f32 %v1416, 2.0
      %v1431 = vmul.f32 %v1423, 2.0
      %v1432 = vsub.f32 %v1352, %v1424
      %v1433 = vsub.f32 %v1353, %v1425
      %v1434 = vsub.f32 %v1354, %v1426
      %v1435 = vsub.f32 %v1355, %v1427
      %v1436 = vsub.f32 %v1356, %v1428
      %v1437 = vsub.f32 %v1357, %v1429
      %v1438 = vsub.f32 %v1358, %v1430
      %v1439 = vsub.f32 %v1359, %v1431
      %v1440 = vmul.f32 %v1432, %v1344
      %v1441 = vmul.f32 %v1433, %v1345
      %v1442 = vmul.f32 %v1434, %v1346
      %v1443 = vmul.f32 %v1435, %v1347
      %v1444 = vmul.f32 %v1436, %v1348
      %v1445 = vmul.f32 %v1437, %v1349
      %v1446 = vmul.f32 %v1438, %v1350
      %v1447 = vmul.f32 %v1439, %v1351
      %v1448 = vmul.f32 %v1301, %v1344
      %v1449 = vmul.f32 %v1302, %v1345
      %v1450 = vmul.f32 %v1303, %v1346
      %v1451 = vmul.f32 %v1304, %v1347
      %v1452 = vmul.f32 %v1305, %v1348
      %v1453 = vmul.f32 %v1306, %v1349
      %v1454 = vmul.f32 %v1307, %v1350
      %v1455 = vmul.f32 %v1308, %v1351
      %v1456 = vlog2.pop %v1269
      %v1457 = vmul.f32 %v1456, 0.6931472
      %v1458 = vlog2.pop %v1270
      %v1459 = vmul.f32 %v1458, 0.6931472
      %v1460 = vlog2.pop %v1271
      %v1461 = vmul.f32 %v1460, 0.6931472
      %v1462 = vlog2.pop %v1272
      %v1463 = vmul.f32 %v1462, 0.6931472
      %v1464 = vlog2.pop %v1273
      %v1465 = vmul.f32 %v1464, 0.6931472
      %v1466 = vlog2.pop %v1274
      %v1467 = vmul.f32 %v1466, 0.6931472
      %v1468 = vlog2.pop %v1275
      %v1469 = vmul.f32 %v1468, 0.6931472
      %v1470 = vlog2.pop %v1276
      %v1471 = vmul.f32 %v1470, 0.6931472
      %v1472 = vlog2.pop %v1301
      %v1473 = vmul.f32 %v1472, 0.6931472
      %v1474 = vlog2.pop %v1302
      %v1475 = vmul.f32 %v1474, 0.6931472
      %v1476 = vlog2.pop %v1303
      %v1477 = vmul.f32 %v1476, 0.6931472
      %v1478 = vlog2.pop %v1304
      %v1479 = vmul.f32 %v1478, 0.6931472
      %v1480 = vlog2.pop %v1305
      %v1481 = vmul.f32 %v1480, 0.6931472
      %v1482 = vlog2.pop %v1306
      %v1483 = vmul.f32 %v1482, 0.6931472
      %v1484 = vlog2.pop %v1307
      %v1485 = vmul.f32 %v1484, 0.6931472
      %v1486 = vlog2.pop %v1308
      %v1487 = vmul.f32 %v1486, 0.6931472
      %v1488 = vsub.f32 %v1457, %v1473
      %v1489 = vsub.f32 %v1459, %v1475
      %v1490 = vsub.f32 %v1461, %v1477
      %v1491 = vsub.f32 %v1463, %v1479
      %v1492 = vsub.f32 %v1465, %v1481
      %v1493 = vsub.f32 %v1467, %v1483
      %v1494 = vsub.f32 %v1469, %v1485
      %v1495 = vsub.f32 %v1471, %v1487
      %v1496 = vand.u32 2147483647, %v1488
      %v1497 = vand.u32 2147483647, %v1489
      %v1498 = vand.u32 2147483647, %v1490
      %v1499 = vand.u32 2147483647, %v1491
      %v1500 = vand.u32 2147483647, %v1492
      %v1501 = vand.u32 2147483647, %v1493
      %v1502 = vand.u32 2147483647, %v1494
      %v1503 = vand.u32 2147483647, %v1495
      %v1504 = vmul.f32 %v1496, 0.5
      %v1505 = vmul.f32 %v1497, 0.5
      %v1506 = vmul.f32 %v1498, 0.5
      %v1507 = vmul.f32 %v1499, 0.5
      %v1508 = vmul.f32 %v1500, 0.5
      %v1509 = vmul.f32 %v1501, 0.5
      %v1510 = vmul.f32 %v1502, 0.5
      %v1511 = vmul.f32 %v1503, 0.5
      %v1512 = vmul.f32 %v1504, %v1344
      %v1513 = vmul.f32 %v1505, %v1345
      %v1514 = vmul.f32 %v1506, %v1346
      %v1515 = vmul.f32 %v1507, %v1347
      %v1516 = vmul.f32 %v1508, %v1348
      %v1517 = vmul.f32 %v1509, %v1349
      %v1518 = vmul.f32 %v1510, %v1350
      %v1519 = vmul.f32 %v1511, %v1351
      %v1520 = vadd.f32 %v1440, %v1444
      %v1521 = vadd.f32 %v1441, %v1445
      %v1522 = vadd.f32 %v1442, %v1446
      %v1523 = vadd.f32 %v1443, %v1447
      %v1524 = vadd.f32 %v1520, %v1522
      %v1525 = vadd.f32 %v1521, %v1523
      %v1526 = vadd.f32 %v1524, %v1525
      %1527 = vst [vmem:[%s240] sm:$0xff] %v1526
      %v1528 = vadd.f32 %v1448, %v1452
      %v1529 = vadd.f32 %v1449, %v1453
      %v1530 = vadd.f32 %v1450, %v1454
      %v1531 = vadd.f32 %v1451, %v1455
      %v1532 = vadd.f32 %v1528, %v1530
      %v1533 = vadd.f32 %v1529, %v1531
      %v1534 = vadd.f32 %v1532, %v1533
      %1535 = vst [vmem:[%s240 + $0x8] sm:$0xff] %v1534
      %v1536 = vadd.f32 %v1512, %v1516
      %v1537 = vadd.f32 %v1513, %v1517
      %v1538 = vadd.f32 %v1514, %v1518
      %v1539 = vadd.f32 %v1515, %v1519
      %v1540 = vadd.f32 %v1536, %v1538
      %v1541 = vadd.f32 %v1537, %v1539
      %v1542 = vadd.f32 %v1540, %v1541
      %1543 = vst [vmem:[%s240 + $0x10] sm:$0xff] %v1542
      %p1544 = scmp.lt.s32.totalorder %s18, 1
      %s1545 = scalar_select %p1544, %s18, 1
      %p1546 = scmp.lt.s32.totalorder %s19, 0
      %s1547 = scalar_select %p1546, %s19, 0
      %s1548 = smul.addr %s1547, 3
      %s1549 = smul.addr %s1545, 3
      %s1550 = sadd.s32 %s1548, %s1549
      %s1551 = smul.addr %s1550, 8
      %s1552 = scalar_lea.vmem %s3, %s1551
      // Predicated region
      $region33: #{stft_loss.1} parent=31 // pred_check
        %p1553 = pneg %p123
      $region34: #{stft_loss.1} parent=31 // pred_check_branch
        %1555 = sbr.rel (%p1553) target = $region36
      $region35: #{stft_loss.1} parent=31 // pred_region
        _
      $region36: #{stft_loss.1} parent=31 // pred_fallthru
        _
    $region32: #{stft_loss.1} parent=5 // pred_fallthru
      _
    %p1556 = scmp.le.s32.totalorder 2, %s9
    // Predicated region
    $region37: #{stft_loss.1} parent=5 // pred_check
      %p1557 = pneg %p1556
    $region38: #{stft_loss.1} parent=5 // pred_check_branch
      %1559 = sbr.rel (%p1557) target = $region40
    $region39: #{stft_loss.1} parent=5 // pred_region
      %s1560 = ssub.s32 %s9, 2
      // Predicated region
      $region41: #{stft_loss.1} parent=39 // pred_check
        %p1561 = pneg %p129
      $region42: #{stft_loss.1} parent=39 // pred_check_branch
        %1563 = sbr.rel (%p1561) target = $region44
      $region43: #{stft_loss.1} parent=39 // pred_region
        %p1564 = scmp.lt.s32.totalorder %s20, 1
        %s1565 = scalar_select %p1564, %s20, 1
        %p1566 = scmp.lt.s32.totalorder %s21, 0
        %s1567 = scalar_select %p1566, %s21, 0
        %s1568 = smul.addr %s1567, 3
        %s1569 = smul.addr %s1565, 3
        %s1570 = sadd.s32 %s1568, %s1569
        %s1571 = smul.addr %s1570, 8
        %s1572 = scalar_lea.vmem %s3, %s1571
      $region44: #{stft_loss.1} parent=39 // pred_fallthru
        _
    $region40: #{stft_loss.1} parent=5 // pred_fallthru
      _
  $region6: #{stft_loss.1} parent=0 // loop_footer
    %s13 = sadd.s32 1, %s9
  $region7: #{stft_loss.1} parent=0 // loop_footer_branch
    %8 = sbr.rel target = $region3
  $region8: #{stft_loss.1} parent=0 // loop_exit
    _

// kernel: stft_loss.1
$region0: #{stft_loss.1}
  #allocation0 [shape = 'u32[]', space=smem, size = 0x4, offset = 0x4, fixed_abs, tag = 'smem constant byte address 0x4 - core index']
  #allocation1 [shape = 'u32[144,128]{1,0:T(1,128)}', space=vmem, size = 0x12000, scoped, tag = 'internal scratch']
  #allocation2 [shape = 'bf16[128,256]{1,0:T(8,128)(2,1)}', space=vmem, size = 0x10000, scoped, tag = 'scratch operand']
  %s0 = inlined_call_operand.vmem [shape: bf16[2,1,64,256], index: 0, kind: input, shape index: {}]
  %s1 = inlined_call_operand.vmem [shape: bf16[2,1,64,256], index: 1, kind: input, shape index: {}]
  %s2 = inlined_call_operand.vmem [shape: bf16[256,256], index: 2, kind: input, shape index: {}]
  %s3 = inlined_call_operand.vmem [shape: f32[2,1,24,128], index: 3, kind: output, shape index: {}]
  %s4 = sld [smem:[#allocation0]]
  $region45: #{stft_loss.1} parent=0
    _
  %s6 = ssub.s32 1, %s4
  %s7 = scalar_select 0, %s6, %s4
  loop: start=0, step=1, limit=4
  $region2: #{stft_loss.1} parent=0 // loop_pre_header
    _
  $region3: #{stft_loss.1} parent=0 // loop_header
    %s9 = sphi 0, %s13
    %p10 = scmp.ge.s32.totalorder %s9, 4
    %s16 = sphi 0, %s28
    %s17 = sphi 0, %s24
    %s18 = sphi 0, %s16
    %s19 = sphi 0, %s17
    %s20 = sphi 0, %s18
    %s21 = sphi 0, %s19
    %s33 = sphi 0, %s35
    %s36 = sphi 0, %s33
    %s37 = sphi 0, %s36
    %s53 = sphi 0, %s37
    %s61 = sphi 0, %s63
    %s64 = sphi 0, %s61
    %s65 = sphi 0, %s64
    %s81 = sphi 0, %s65
    %s85 = sphi 0, %s85
    %s87 = sphi 0, %s85
    %s88 = sphi 0, %s87
    %s102 = sphi 0, %s88
    %s110 = sphi 0, %s112
    %s113 = sphi 0, %s110
    %s114 = sphi 0, %s113
    %s130 = sphi 0, %s114
  $region4: #{stft_loss.1} parent=0 // loop_header_branch
    %12 = sbr.rel (%p10) target = $region8
  $region5: #{stft_loss.1} parent=0 // loop_body
    %s14 = ssub.s32 %s9, 1
    %s15 = ssub.s32 %s9, 2
    %s22 = sadd.s32 1, %s17
    %p23 = scmp.ge.s32.totalorder %s22, 1
    %s24 = scalar_select %p23, 0, %s22
    %s25 = sadd.s32 1, %s16
    %s26 = scalar_select %p23, %s25, %s16
    %p27 = scmp.ge.s32.totalorder %s26, 2
    %s28 = scalar_select %p27, 0, %s26
    %s29 = ssub.s32 %s16, %s28
    %s30 = ssub.s32 %s17, %s24
    %s31 = sor.u32 %s29, %s30
    %p32 = scmp.eq.s32.totalorder %s31, 0
    %s34 = sadd.s32 %s33, 1
    %s35 = scalar_select %p32, %s33, %s34
    %p38 = pneg %p32
    %p39 = scmp.eq.s32.totalorder %s9, 1
    %p40 = por %p38, %p39
    %p41 = scmp.ne.s32.totalorder %s33, %s36
    %p42 = scmp.eq.s32.totalorder %s9, 0
    %p43 = por %p41, %p42
    %p44 = scmp.ne.s32.totalorder %s33, %s36
    %p45 = scmp.eq.s32.totalorder %s14, 1
    %p46 = por %p44, %p45
    %p47 = scmp.ne.s32.totalorder %s36, %s37
    %p48 = scmp.eq.s32.totalorder %s14, 0
    %p49 = por %p47, %p48
    %p50 = scmp.ne.s32.totalorder %s36, %s37
    %p51 = scmp.eq.s32.totalorder %s15, 1
    %p52 = por %p50, %p51
    %p54 = scmp.ne.s32.totalorder %s37, %s53
    %p55 = scmp.eq.s32.totalorder %s15, 0
    %p56 = por %p54, %p55
    %s57 = ssub.s32 %s16, %s28
    %s58 = ssub.s32 %s17, %s24
    %s59 = sor.u32 %s57, %s58
    %p60 = scmp.eq.s32.totalorder %s59, 0
    %s62 = sadd.s32 %s61, 1
    %s63 = scalar_select %p60, %s61, %s62
    %p66 = pneg %p60
    %p67 = scmp.eq.s32.totalorder %s9, 1
    %p68 = por %p66, %p67
    %p69 = scmp.ne.s32.totalorder %s61, %s64
    %p70 = scmp.eq.s32.totalorder %s9, 0
    %p71 = por %p69, %p70
    %p72 = scmp.ne.s32.totalorder %s61, %s64
    %p73 = scmp.eq.s32.totalorder %s14, 1
    %p74 = por %p72, %p73
    %p75 = scmp.ne.s32.totalorder %s64, %s65
    %p76 = scmp.eq.s32.totalorder %s14, 0
    %p77 = por %p75, %p76
    %p78 = scmp.ne.s32.totalorder %s64, %s65
    %p79 = scmp.eq.s32.totalorder %s15, 1
    %p80 = por %p78, %p79
    %p82 = scmp.ne.s32.totalorder %s65, %s81
    %p83 = scmp.eq.s32.totalorder %s15, 0
    %p84 = por %p82, %p83
    %s86 = sadd.s32 %s85, 1
    %p89 = scmp.eq.s32.totalorder %s9, 1
    %p90 = scmp.ne.s32.totalorder %s85, %s87
    %p91 = scmp.eq.s32.totalorder %s9, 0
    %p92 = por %p90, %p91
    %p93 = scmp.ne.s32.totalorder %s85, %s87
    %p94 = scmp.eq.s32.totalorder %s14, 1
    %p95 = por %p93, %p94
    %p96 = scmp.ne.s32.totalorder %s87, %s88
    %p97 = scmp.eq.s32.totalorder %s14, 0
    %p98 = por %p96, %p97
    %p99 = scmp.ne.s32.totalorder %s87, %s88
    %p100 = scmp.eq.s32.totalorder %s15, 1
    %p101 = por %p99, %p100
    %p103 = scmp.ne.s32.totalorder %s88, %s102
    %p104 = scmp.eq.s32.totalorder %s15, 0
    %p105 = por %p103, %p104
    %s106 = ssub.s32 %s16, %s28
    %s107 = ssub.s32 %s17, %s24
    %s108 = sor.u32 %s106, %s107
    %p109 = scmp.eq.s32.totalorder %s108, 0
    %s111 = sadd.s32 %s110, 1
    %s112 = scalar_select %p109, %s110, %s111
    %p115 = pneg %p109
    %p116 = scmp.eq.s32.totalorder %s9, 1
    %p117 = por %p115, %p116
    %p118 = scmp.ne.s32.totalorder %s110, %s113
    %p119 = scmp.eq.s32.totalorder %s9, 0
    %p120 = por %p118, %p119
    %p121 = scmp.ne.s32.totalorder %s110, %s113
    %p122 = scmp.eq.s32.totalorder %s14, 1
    %p123 = por %p121, %p122
    %p124 = scmp.ne.s32.totalorder %s113, %s114
    %p125 = scmp.eq.s32.totalorder %s14, 0
    %p126 = por %p124, %p125
    %p127 = scmp.ne.s32.totalorder %s113, %s114
    %p128 = scmp.eq.s32.totalorder %s15, 1
    %p129 = por %p127, %p128
    %p131 = scmp.ne.s32.totalorder %s114, %s130
    %p132 = scmp.eq.s32.totalorder %s15, 0
    %p133 = por %p131, %p132
    %p134 = scmp.le.s32.totalorder 1, %s9
    %p135 = scmp.lt.s32.totalorder %s9, 3
    %p136 = pnand %p134, %p135
    %p137 = pneg %p136
    // Predicated region
    $region9: #{stft_loss.1} parent=5 // pred_check
      _
    $region10: #{stft_loss.1} parent=5 // pred_check_branch
      %139 = sbr.rel (%p136) target = $region12
    $region11: #{stft_loss.1} parent=5 // pred_region
      %s140 = ssub.s32 %s9, 1
      // Predicated region
      $region13: #{stft_loss.1} parent=11 // pred_check
        %p141 = pneg %p98
      $region14: #{stft_loss.1} parent=11 // pred_check_branch
        %143 = sbr.rel (%p141) target = $region16
      $region15: #{stft_loss.1} parent=11 // pred_region
        _
      $region16: #{stft_loss.1} parent=11 // pred_fallthru
        _
    $region12: #{stft_loss.1} parent=5 // pred_fallthru
      _
    %p144 = scmp.lt.s32.totalorder %s9, 2
    // Predicated region
    $region17: #{stft_loss.1} parent=5 // pred_check
      %p145 = pneg %p144
    $region18: #{stft_loss.1} parent=5 // pred_check_branch
      %147 = sbr.rel (%p145) target = $region20
    $region19: #{stft_loss.1} parent=5 // pred_region
      // Predicated region
      $region21: #{stft_loss.1} parent=19 // pred_check
        %p148 = pneg %p43
      $region22: #{stft_loss.1} parent=19 // pred_check_branch
        %150 = sbr.rel (%p148) target = $region24
      $region23: #{stft_loss.1} parent=19 // pred_region
        %p151 = scmp.lt.s32.totalorder %s16, 1
        %s152 = scalar_select %p151, %s16, 1
        %p153 = scmp.lt.s32.totalorder %s17, 0
        %s154 = scalar_select %p153, %s17, 0
        %s155 = smul.addr %s154, 16
        %s156 = smul.addr %s152, 16
        %s157 = sadd.s32 %s155, %s156
        %s158 = smul.addr %s157, 4
        %s159 = scalar_lea.vmem %s0, %s158
      $region24: #{stft_loss.1} parent=19 // pred_fallthru
        _
      // Predicated region
      $region25: #{stft_loss.1} parent=19 // pred_check
        %p160 = pneg %p71
      $region26: #{stft_loss.1} parent=19 // pred_check_branch
        %162 = sbr.rel (%p160) target = $region28
      $region27: #{stft_loss.1} parent=19 // pred_region
        %p163 = scmp.lt.s32.totalorder %s16, 1
        %s164 = scalar_select %p163, %s16, 1
        %p165 = scmp.lt.s32.totalorder %s17, 0
        %s166 = scalar_select %p165, %s17, 0
        %s167 = smul.addr %s166, 16
        %s168 = smul.addr %s164, 16
        %s169 = sadd.s32 %s167, %s168
        %s170 = smul.addr %s169, 4
        %s171 = scalar_lea.vmem %s1, %s170
      $region28: #{stft_loss.1} parent=19 // pred_fallthru
        _
    $region20: #{stft_loss.1} parent=5 // pred_fallthru
      _
    %p172 = scmp.le.s32.totalorder 1, %s9
    %p173 = scmp.lt.s32.totalorder %s9, 3
    %p174 = pnand %p172, %p173
    %p175 = pneg %p174
    // Predicated region
    $region29: #{stft_loss.1} parent=5 // pred_check
      _
    $region30: #{stft_loss.1} parent=5 // pred_check_branch
      %177 = sbr.rel (%p174) target = $region32
    $region31: #{stft_loss.1} parent=5 // pred_region
      %s178 = ssub.s32 %s9, 1
      %p179 = scmp.lt.s32.totalorder %s18, 1
      %s180 = scalar_select %p179, %s18, 1
      %p181 = scmp.lt.s32.totalorder %s19, 0
      %s182 = scalar_select %p181, %s19, 0
      %s183 = smul.addr %s182, 16
      %s184 = smul.addr %s180, 16
      %s185 = sadd.s32 %s183, %s184
      %s186 = smul.addr %s185, 4
      %s187 = scalar_lea.vmem %s0, %s186
      %p188 = pneg %p49
      %p189 = pneg %p46
      %p190 = scmp.lt.s32.totalorder %s18, 1
      %s191 = scalar_select %p190, %s18, 1
      %p192 = scmp.lt.s32.totalorder %s19, 0
      %s193 = scalar_select %p192, %s19, 0
      %s194 = smul.addr %s193, 16
      %s195 = smul.addr %s191, 16
      %s196 = sadd.s32 %s194, %s195
      %s197 = smul.addr %s196, 4
      %s198 = scalar_lea.vmem %s1, %s197
      %p199 = pneg %p77
      %p200 = pneg %p74
      %p201 = pneg %p98
      %p202 = pneg %p95
      %p203 = pneg %p126
      %p204 = pneg %p123
      %p205 = scmp.lt.s32.totalorder %s18, 1
      %s206 = scalar_select %p205, %s18, 1
      %p207 = scmp.lt.s32.totalorder %s19, 0
      %s208 = scalar_select %p207, %s19, 0
      %s209 = smul.addr %s208, 3
      %s210 = smul.addr %s206, 3
      %s211 = sadd.s32 %s209, %s210
      %s212 = smul.addr %s211, 8
      %s213 = scalar_lea.vmem %s3, %s212
      %p214 = scmp.lt.s32.totalorder %s18, 1
      %s215 = scalar_select %p214, %s18, 1
      %p216 = scmp.lt.s32.totalorder %s19, 0
      %s217 = scalar_select %p216, %s19, 0
      %s218 = smul.addr %s217, 16
      %s219 = smul.addr %s215, 16
      %s220 = sadd.s32 %s218, %s219
      %s221 = smul.addr %s220, 4
      %s222 = scalar_lea.vmem %s0, %s221
      %p223 = scmp.lt.s32.totalorder %s18, 1
      %s224 = scalar_select %p223, %s18, 1
      %p225 = scmp.lt.s32.totalorder %s19, 0
      %s226 = scalar_select %p225, %s19, 0
      %s227 = smul.addr %s226, 16
      %s228 = smul.addr %s224, 16
      %s229 = sadd.s32 %s227, %s228
      %s230 = smul.addr %s229, 4
      %s231 = scalar_lea.vmem %s1, %s230
      %p232 = scmp.lt.s32.totalorder %s18, 1
      %s233 = scalar_select %p232, %s18, 1
      %p234 = scmp.lt.s32.totalorder %s19, 0
      %s235 = scalar_select %p234, %s19, 0
      %s236 = smul.addr %s235, 3
      %s237 = smul.addr %s233, 3
      %s238 = sadd.s32 %s236, %s237
      %s239 = smul.addr %s238, 8
      %s240 = scalar_lea.vmem %s3, %s239
      %v241 = vld [vmem:[%s222] sm:$0xff]
      %v242 = vld [vmem:[%s222 + $0x8] sm:$0xff]
      %v243 = vld [vmem:[%s222 + $0x10] sm:$0xff]
      %v244 = vld [vmem:[%s222 + $0x18] sm:$0xff]
      %v245 = vld [vmem:[%s222 + $0x20] sm:$0xff]
      %v246 = vld [vmem:[%s222 + $0x28] sm:$0xff]
      %v247 = vld [vmem:[%s222 + $0x30] sm:$0xff]
      %v248 = vld [vmem:[%s222 + $0x38] sm:$0xff]
      %249 = vst [vmem:[#allocation2] sm:$0xff] %v241
      %250 = vst [vmem:[#allocation2 + $0x8] sm:$0xff] %v242
      %251 = vst [vmem:[#allocation2 + $0x10] sm:$0xff] %v243
      %252 = vst [vmem:[#allocation2 + $0x18] sm:$0xff] %v244
      %253 = vst [vmem:[#allocation2 + $0x20] sm:$0xff] %v245
      %254 = vst [vmem:[#allocation2 + $0x28] sm:$0xff] %v246
      %255 = vst [vmem:[#allocation2 + $0x30] sm:$0xff] %v247
      %256 = vst [vmem:[#allocation2 + $0x38] sm:$0xff] %v248
      %v257 = vld [vmem:[%s231] sm:$0xff]
      %v258 = vld [vmem:[%s231 + $0x8] sm:$0xff]
      %v259 = vld [vmem:[%s231 + $0x10] sm:$0xff]
      %v260 = vld [vmem:[%s231 + $0x18] sm:$0xff]
      %v261 = vld [vmem:[%s231 + $0x20] sm:$0xff]
      %v262 = vld [vmem:[%s231 + $0x28] sm:$0xff]
      %v263 = vld [vmem:[%s231 + $0x30] sm:$0xff]
      %v264 = vld [vmem:[%s231 + $0x38] sm:$0xff]
      %265 = vst [vmem:[#allocation2 + $0x40] sm:$0xff] %v257
      %266 = vst [vmem:[#allocation2 + $0x48] sm:$0xff] %v258
      %267 = vst [vmem:[#allocation2 + $0x50] sm:$0xff] %v259
      %268 = vst [vmem:[#allocation2 + $0x58] sm:$0xff] %v260
      %269 = vst [vmem:[#allocation2 + $0x60] sm:$0xff] %v261
      %270 = vst [vmem:[#allocation2 + $0x68] sm:$0xff] %v262
      %271 = vst [vmem:[#allocation2 + $0x70] sm:$0xff] %v263
      %272 = vst [vmem:[#allocation2 + $0x78] sm:$0xff] %v264
      %v273 = vld [vmem:[#allocation2] sm:$0xff]
      %v274 = vld [vmem:[#allocation2 + $0x8] sm:$0xff]
      %v275 = vld [vmem:[#allocation2 + $0x10] sm:$0xff]
      %v276 = vld [vmem:[#allocation2 + $0x18] sm:$0xff]
      %v277 = vld [vmem:[#allocation2 + $0x20] sm:$0xff]
      %v278 = vld [vmem:[#allocation2 + $0x28] sm:$0xff]
      %v279 = vld [vmem:[#allocation2 + $0x30] sm:$0xff]
      %v280 = vld [vmem:[#allocation2 + $0x38] sm:$0xff]
      %v281 = vld [vmem:[#allocation2 + $0x40] sm:$0xff]
      %v282 = vld [vmem:[#allocation2 + $0x48] sm:$0xff]
      %v283 = vld [vmem:[#allocation2 + $0x50] sm:$0xff]
      %v284 = vld [vmem:[#allocation2 + $0x58] sm:$0xff]
      %v285 = vld [vmem:[#allocation2 + $0x60] sm:$0xff]
      %v286 = vld [vmem:[#allocation2 + $0x68] sm:$0xff]
      %v287 = vld [vmem:[#allocation2 + $0x70] sm:$0xff]
      %v288 = vld [vmem:[#allocation2 + $0x78] sm:$0xff]
      %v289 = vld [vmem:[%s2] sm:$0xff]
      %v290 = vld [vmem:[%s2 + $0x8] sm:$0xff]
      %v291 = vld [vmem:[%s2 + $0x10] sm:$0xff]
      %v292 = vld [vmem:[%s2 + $0x18] sm:$0xff]
      %v293 = vld [vmem:[%s2 + $0x20] sm:$0xff]
      %v294 = vld [vmem:[%s2 + $0x28] sm:$0xff]
      %v295 = vld [vmem:[%s2 + $0x30] sm:$0xff]
      %v296 = vld [vmem:[%s2 + $0x38] sm:$0xff]
      %v297 = vld [vmem:[%s2 + $0x40] sm:$0xff]
      %v298 = vld [vmem:[%s2 + $0x48] sm:$0xff]
      %v299 = vld [vmem:[%s2 + $0x50] sm:$0xff]
      %v300 = vld [vmem:[%s2 + $0x58] sm:$0xff]
      %v301 = vld [vmem:[%s2 + $0x60] sm:$0xff]
      %v302 = vld [vmem:[%s2 + $0x68] sm:$0xff]
      %v303 = vld [vmem:[%s2 + $0x70] sm:$0xff]
      %v304 = vld [vmem:[%s2 + $0x78] sm:$0xff]
      %v305 = vld [vmem:[%s2 + $0x80] sm:$0xff]
      %v306 = vld [vmem:[%s2 + $0x88] sm:$0xff]
      %v307 = vld [vmem:[%s2 + $0x90] sm:$0xff]
      %v308 = vld [vmem:[%s2 + $0x98] sm:$0xff]
      %v309 = vld [vmem:[%s2 + $0xa0] sm:$0xff]
      %v310 = vld [vmem:[%s2 + $0xa8] sm:$0xff]
      %v311 = vld [vmem:[%s2 + $0xb0] sm:$0xff]
      %v312 = vld [vmem:[%s2 + $0xb8] sm:$0xff]
      %v313 = vld [vmem:[%s2 + $0xc0] sm:$0xff]
      %v314 = vld [vmem:[%s2 + $0xc8] sm:$0xff]
      %v315 = vld [vmem:[%s2 + $0xd0] sm:$0xff]
      %v316 = vld [vmem:[%s2 + $0xd8] sm:$0xff]
      %v317 = vld [vmem:[%s2 + $0xe0] sm:$0xff]
      %v318 = vld [vmem:[%s2 + $0xe8] sm:$0xff]
      %v319 = vld [vmem:[%s2 + $0xf0] sm:$0xff]
      %v320 = vld [vmem:[%s2 + $0xf8] sm:$0xff]
      %v337 = vunpack.c.l.b16 %v273
      %v338 = vunpack.c.h.b16 %v273
      %v339 = vunpack.c.l.b16 %v274
      %v340 = vunpack.c.h.b16 %v274
      %v341 = vunpack.c.l.b16 %v275
      %v342 = vunpack.c.h.b16 %v275
      %v343 = vunpack.c.l.b16 %v276
      %v344 = vunpack.c.h.b16 %v276
      %v345 = vunpack.c.l.b16 %v277
      %v346 = vunpack.c.h.b16 %v277
      %v347 = vunpack.c.l.b16 %v278
      %v348 = vunpack.c.h.b16 %v278
      %v349 = vunpack.c.l.b16 %v279
      %v350 = vunpack.c.h.b16 %v279
      %v351 = vunpack.c.l.b16 %v280
      %v352 = vunpack.c.h.b16 %v280
      %v353 = vunpack.c.l.b16 %v281
      %v354 = vunpack.c.h.b16 %v281
      %v355 = vunpack.c.l.b16 %v282
      %v356 = vunpack.c.h.b16 %v282
      %v357 = vunpack.c.l.b16 %v283
      %v358 = vunpack.c.h.b16 %v283
      %v359 = vunpack.c.l.b16 %v284
      %v360 = vunpack.c.h.b16 %v284
      %v361 = vunpack.c.l.b16 %v285
      %v362 = vunpack.c.h.b16 %v285
      %v363 = vunpack.c.l.b16 %v286
      %v364 = vunpack.c.h.b16 %v286
      %v365 = vunpack.c.l.b16 %v287
      %v366 = vunpack.c.h.b16 %v287
      %v367 = vunpack.c.l.b16 %v288
      %v368 = vunpack.c.h.b16 %v288
      %v369 = vpack.c.b16 %v339, %v337
      %v370 = vpack.c.b16 %v340, %v338
      %v371 = vpack.c.b16 %v343, %v341
      %v372 = vpack.c.b16 %v344, %v342
      %v373 = vpack.c.b16 %v347, %v345
      %v374 = vpack.c.b16 %v348, %v346
      %v375 = vpack.c.b16 %v351, %v349
      %v376 = vpack.c.b16 %v352, %v350
      %v377 = vpack.c.b16 %v355, %v353
      %v378 = vpack.c.b16 %v356, %v354
      %v379 = vpack.c.b16 %v359, %v357
      %v380 = vpack.c.b16 %v360, %v358
      %v381 = vpack.c.b16 %v363, %v361
      %v382 = vpack.c.b16 %v364, %v362
      %v383 = vpack.c.b16 %v367, %v365
      %v384 = vpack.c.b16 %v368, %v366
      %v433 = vunpack.c.l.b16 %v289
      %v434 = vunpack.c.h.b16 %v289
      %v435 = vunpack.c.l.b16 %v290
      %v436 = vunpack.c.h.b16 %v290
      %v437 = vunpack.c.l.b16 %v291
      %v438 = vunpack.c.h.b16 %v291
      %v439 = vunpack.c.l.b16 %v292
      %v440 = vunpack.c.h.b16 %v292
      %v441 = vunpack.c.l.b16 %v293
      %v442 = vunpack.c.h.b16 %v293
      %v443 = vunpack.c.l.b16 %v294
      %v444 = vunpack.c.h.b16 %v294
      %v445 = vunpack.c.l.b16 %v295
      %v446 = vunpack.c.h.b16 %v295
      %v447 = vunpack.c.l.b16 %v296
      %v448 = vunpack.c.h.b16 %v296
      %v449 = vunpack.c.l.b16 %v297
      %v450 = vunpack.c.h.b16 %v297
      %v451 = vunpack.c.l.b16 %v298
      %v452 = vunpack.c.h.b16 %v298
      %v453 = vunpack.c.l.b16 %v299
      %v454 = vunpack.c.h.b16 %v299
      %v455 = vunpack.c.l.b16 %v300
      %v456 = vunpack.c.h.b16 %v300
      %v457 = vunpack.c.l.b16 %v301
      %v458 = vunpack.c.h.b16 %v301
      %v459 = vunpack.c.l.b16 %v302
      %v460 = vunpack.c.h.b16 %v302
      %v461 = vunpack.c.l.b16 %v303
      %v462 = vunpack.c.h.b16 %v303
      %v463 = vunpack.c.l.b16 %v304
      %v464 = vunpack.c.h.b16 %v304
      %v465 = vunpack.c.l.b16 %v305
      %v466 = vunpack.c.h.b16 %v305
      %v467 = vunpack.c.l.b16 %v306
      %v468 = vunpack.c.h.b16 %v306
      %v469 = vunpack.c.l.b16 %v307
      %v470 = vunpack.c.h.b16 %v307
      %v471 = vunpack.c.l.b16 %v308
      %v472 = vunpack.c.h.b16 %v308
      %v473 = vunpack.c.l.b16 %v309
      %v474 = vunpack.c.h.b16 %v309
      %v475 = vunpack.c.l.b16 %v310
      %v476 = vunpack.c.h.b16 %v310
      %v477 = vunpack.c.l.b16 %v311
      %v478 = vunpack.c.h.b16 %v311
      %v479 = vunpack.c.l.b16 %v312
      %v480 = vunpack.c.h.b16 %v312
      %v481 = vunpack.c.l.b16 %v313
      %v482 = vunpack.c.h.b16 %v313
      %v483 = vunpack.c.l.b16 %v314
      %v484 = vunpack.c.h.b16 %v314
      %v485 = vunpack.c.l.b16 %v315
      %v486 = vunpack.c.h.b16 %v315
      %v487 = vunpack.c.l.b16 %v316
      %v488 = vunpack.c.h.b16 %v316
      %v489 = vunpack.c.l.b16 %v317
      %v490 = vunpack.c.h.b16 %v317
      %v491 = vunpack.c.l.b16 %v318
      %v492 = vunpack.c.h.b16 %v318
      %v493 = vunpack.c.l.b16 %v319
      %v494 = vunpack.c.h.b16 %v319
      %v495 = vunpack.c.l.b16 %v320
      %v496 = vunpack.c.h.b16 %v320
      %v497 = vpack.c.b16 %v435, %v433
      %v498 = vpack.c.b16 %v436, %v434
      %v499 = vpack.c.b16 %v439, %v437
      %v500 = vpack.c.b16 %v440, %v438
      %v501 = vpack.c.b16 %v443, %v441
      %v502 = vpack.c.b16 %v444, %v442
      %v503 = vpack.c.b16 %v447, %v445
      %v504 = vpack.c.b16 %v448, %v446
      %v505 = vpack.c.b16 %v451, %v449
      %v506 = vpack.c.b16 %v452, %v450
      %v507 = vpack.c.b16 %v455, %v453
      %v508 = vpack.c.b16 %v456, %v454
      %v509 = vpack.c.b16 %v459, %v457
      %v510 = vpack.c.b16 %v460, %v458
      %v511 = vpack.c.b16 %v463, %v461
      %v512 = vpack.c.b16 %v464, %v462
      %v513 = vpack.c.b16 %v467, %v465
      %v514 = vpack.c.b16 %v468, %v466
      %v515 = vpack.c.b16 %v471, %v469
      %v516 = vpack.c.b16 %v472, %v470
      %v517 = vpack.c.b16 %v475, %v473
      %v518 = vpack.c.b16 %v476, %v474
      %v519 = vpack.c.b16 %v479, %v477
      %v520 = vpack.c.b16 %v480, %v478
      %v521 = vpack.c.b16 %v483, %v481
      %v522 = vpack.c.b16 %v484, %v482
      %v523 = vpack.c.b16 %v487, %v485
      %v524 = vpack.c.b16 %v488, %v486
      %v525 = vpack.c.b16 %v491, %v489
      %v526 = vpack.c.b16 %v492, %v490
      %v527 = vpack.c.b16 %v495, %v493
      %v528 = vpack.c.b16 %v496, %v494
      %561 = vmatprep.subr.bf16.mxu0 %v512
      %562 = vmatpush1.bf16.msra.mxu0 %v511
      %563 = vmatprep.subr.bf16.mxu0 %v510
      %564 = vmatpush1.bf16.msra.mxu0 %v509
      %565 = vmatprep.subr.bf16.mxu0 %v508
      %566 = vmatpush1.bf16.msra.mxu0 %v507
      %567 = vmatprep.subr.bf16.mxu0 %v506
      %568 = vmatpush1.bf16.msra.mxu0 %v505
      %569 = vmatprep.subr.bf16.mxu0 %v504
      %570 = vmatpush1.bf16.msra.mxu0 %v503
      %571 = vmatprep.subr.bf16.mxu0 %v502
      %572 = vmatpush1.bf16.msra.mxu0 %v501
      %573 = vmatprep.subr.bf16.mxu0 %v500
      %574 = vmatpush1.bf16.msra.mxu0 %v499
      %575 = vmatprep.subr.bf16.mxu0 %v498
      %576 = vmatpush1.bf16.msra.mxu0 %v497
      %577 = vmatprep.subr.bf16.mxu0 %v528
      %578 = vmatpush2.bf16.msra.mxu0 %v527
      %579 = vmatprep.subr.bf16.mxu0 %v526
      %580 = vmatpush2.bf16.msra.mxu0 %v525
      %581 = vmatprep.subr.bf16.mxu0 %v524
      %582 = vmatpush2.bf16.msra.mxu0 %v523
      %583 = vmatprep.subr.bf16.mxu0 %v522
      %584 = vmatpush2.bf16.msra.mxu0 %v521
      %585 = vmatprep.subr.bf16.mxu0 %v520
      %586 = vmatpush2.bf16.msra.mxu0 %v519
      %587 = vmatprep.subr.bf16.mxu0 %v518
      %588 = vmatpush2.bf16.msra.mxu0 %v517
      %589 = vmatprep.subr.bf16.mxu0 %v516
      %590 = vmatpush2.bf16.msra.mxu0 %v515
      %591 = vmatprep.subr.bf16.mxu0 %v514
      %592 = vmatpush2.bf16.msra.mxu0 %v513
      %593 = vmatprep.mubr.bf16.mxu0 %v370
      %594 = vmatmul.mubr.bf16.gmra.mxu0 %v369
      %v595 = vpop.f32.mrf.mxu0
      %v596 = vadd.f32 0.0, %v595
      %v597 = vpop.f32.mrf.mxu0
      %v598 = vadd.f32 0.0, %v597
      %v599 = vpop.f32.mrf.mxu0
      %v600 = vadd.f32 0.0, %v599
      %v601 = vpop.f32.mrf.mxu0
      %v602 = vadd.f32 0.0, %v601
      %603 = vmatprep.mubr.bf16.mxu0 %v372
      %604 = vmatmul.mubr.bf16.gmra.mxu0 %v371
      %v605 = vpop.f32.mrf.mxu0
      %v606 = vadd.f32 0.0, %v605
      %v607 = vpop.f32.mrf.mxu0
      %v608 = vadd.f32 0.0, %v607
      %v609 = vpop.f32.mrf.mxu0
      %v610 = vadd.f32 0.0, %v609
      %v611 = vpop.f32.mrf.mxu0
      %v612 = vadd.f32 0.0, %v611
      %613 = vmatprep.mubr.bf16.mxu0 %v374
      %614 = vmatmul.mubr.bf16.gmra.mxu0 %v373
      %v615 = vpop.f32.mrf.mxu0
      %v616 = vadd.f32 0.0, %v615
      %v617 = vpop.f32.mrf.mxu0
      %v618 = vadd.f32 0.0, %v617
      %v619 = vpop.f32.mrf.mxu0
      %v620 = vadd.f32 0.0, %v619
      %v621 = vpop.f32.mrf.mxu0
      %v622 = vadd.f32 0.0, %v621
      %623 = vmatprep.mubr.bf16.mxu0 %v376
      %624 = vmatmul.mubr.bf16.gmra.mxu0 %v375
      %v625 = vpop.f32.mrf.mxu0
      %v626 = vadd.f32 0.0, %v625
      %v627 = vpop.f32.mrf.mxu0
      %v628 = vadd.f32 0.0, %v627
      %v629 = vpop.f32.mrf.mxu0
      %v630 = vadd.f32 0.0, %v629
      %v631 = vpop.f32.mrf.mxu0
      %v632 = vadd.f32 0.0, %v631
      %633 = vmatprep.mubr.bf16.mxu0 %v378
      %634 = vmatmul.mubr.bf16.gmra.mxu0 %v377
      %v635 = vpop.f32.mrf.mxu0
      %v636 = vadd.f32 0.0, %v635
      %v637 = vpop.f32.mrf.mxu0
      %v638 = vadd.f32 0.0, %v637
      %v639 = vpop.f32.mrf.mxu0
      %v640 = vadd.f32 0.0, %v639
      %v641 = vpop.f32.mrf.mxu0
      %v642 = vadd.f32 0.0, %v641
      %643 = vmatprep.mubr.bf16.mxu0 %v380
      %644 = vmatmul.mubr.bf16.gmra.mxu0 %v379
      %v645 = vpop.f32.mrf.mxu0
      %v646 = vadd.f32 0.0, %v645
      %v647 = vpop.f32.mrf.mxu0
      %v648 = vadd.f32 0.0, %v647
      %v649 = vpop.f32.mrf.mxu0
      %v650 = vadd.f32 0.0, %v649
      %v651 = vpop.f32.mrf.mxu0
      %v652 = vadd.f32 0.0, %v651
      %653 = vmatprep.mubr.bf16.mxu0 %v382
      %654 = vmatmul.mubr.bf16.gmra.mxu0 %v381
      %v655 = vpop.f32.mrf.mxu0
      %v656 = vadd.f32 0.0, %v655
      %v657 = vpop.f32.mrf.mxu0
      %v658 = vadd.f32 0.0, %v657
      %v659 = vpop.f32.mrf.mxu0
      %v660 = vadd.f32 0.0, %v659
      %v661 = vpop.f32.mrf.mxu0
      %v662 = vadd.f32 0.0, %v661
      %663 = vmatprep.mubr.bf16.mxu0 %v384
      %664 = vmatmul.mubr.bf16.gmra.mxu0 %v383
      %v665 = vpop.f32.mrf.mxu0
      %v666 = vadd.f32 0.0, %v665
      %v667 = vpop.f32.mrf.mxu0
      %v668 = vadd.f32 0.0, %v667
      %v669 = vpop.f32.mrf.mxu0
      %v670 = vadd.f32 0.0, %v669
      %v671 = vpop.f32.mrf.mxu0
      %v672 = vadd.f32 0.0, %v671
      %673 = vdwg.mxu0
      %v674 = vmul.f32 %v596, %v596
      %v675 = vmul.f32 %v600, %v600
      %v676 = vmul.f32 %v606, %v606
      %v677 = vmul.f32 %v610, %v610
      %v678 = vmul.f32 %v616, %v616
      %v679 = vmul.f32 %v620, %v620
      %v680 = vmul.f32 %v626, %v626
      %v681 = vmul.f32 %v630, %v630
      %v682 = vmul.f32 %v598, %v598
      %v683 = vmul.f32 %v602, %v602
      %v684 = vmul.f32 %v608, %v608
      %v685 = vmul.f32 %v612, %v612
      %v686 = vmul.f32 %v618, %v618
      %v687 = vmul.f32 %v622, %v622
      %v688 = vmul.f32 %v628, %v628
      %v689 = vmul.f32 %v632, %v632
      %v690 = vadd.f32 %v674, %v682
      %v691 = vadd.f32 %v675, %v683
      %v692 = vadd.f32 %v676, %v684
      %v693 = vadd.f32 %v677, %v685
      %v694 = vadd.f32 %v678, %v686
      %v695 = vadd.f32 %v679, %v687
      %v696 = vadd.f32 %v680, %v688
      %v697 = vadd.f32 %v681, %v689
      %v698 = vmax.f32 %v690, 1e-07
      %v699 = vmax.f32 %v691, 1e-07
      %v700 = vmax.f32 %v692, 1e-07
      %v701 = vmax.f32 %v693, 1e-07
      %v702 = vmax.f32 %v694, 1e-07
      %v703 = vmax.f32 %v695, 1e-07
      %v704 = vmax.f32 %v696, 1e-07
      %v705 = vmax.f32 %v697, 1e-07
      %v706 = vmul.f32 %v636, %v636
      %v707 = vmul.f32 %v640, %v640
      %v708 = vmul.f32 %v646, %v646
      %v709 = vmul.f32 %v650, %v650
      %v710 = vmul.f32 %v656, %v656
      %v711 = vmul.f32 %v660, %v660
      %v712 = vmul.f32 %v666, %v666
      %v713 = vmul.f32 %v670, %v670
      %v714 = vmul.f32 %v638, %v638
      %v715 = vmul.f32 %v642, %v642
      %v716 = vmul.f32 %v648, %v648
      %v717 = vmul.f32 %v652, %v652
      %v718 = vmul.f32 %v658, %v658
      %v719 = vmul.f32 %v662, %v662
      %v720 = vmul.f32 %v668, %v668
      %v721 = vmul.f32 %v672, %v672
      %v722 = vadd.f32 %v706, %v714
      %v723 = vadd.f32 %v707, %v715
      %v724 = vadd.f32 %v708, %v716
      %v725 = vadd.f32 %v709, %v717
      %v726 = vadd.f32 %v710, %v718
      %v727 = vadd.f32 %v711, %v719
      %v728 = vadd.f32 %v712, %v720
      %v729 = vadd.f32 %v713, %v721
      %v730 = vmax.f32 %v722, 1e-07
      %v731 = vmax.f32 %v723, 1e-07
      %v732 = vmax.f32 %v724, 1e-07
      %v733 = vmax.f32 %v725, 1e-07
      %v734 = vmax.f32 %v726, 1e-07
      %v735 = vmax.f32 %v727, 1e-07
      %v736 = vmax.f32 %v728, 1e-07
      %v737 = vmax.f32 %v729, 1e-07
      %v738 = vlaneseq
      %v739 = vshrl.u32 %v738, 7
      %v740 = vadd.s32 %v739, 8
      %v741 = vadd.s32 %v739, 16
      %v742 = vadd.s32 %v739, 24
      %v743 = vadd.s32 %v739, 32
      %v744 = vadd.s32 %v739, 40
      %v745 = vadd.s32 %v739, 48
      %v746 = vadd.s32 %v739, 56
      %s747 = smul.u32 %s19, 64
      %v748 = vstv %s747
      %v749 = vadd.s32 %v748, %v739
      %v750 = vadd.s32 %v748, %v740
      %v751 = vadd.s32 %v748, %v741
      %v752 = vadd.s32 %v748, %v742
      %v753 = vadd.s32 %v748, %v743
      %v754 = vadd.s32 %v748, %v744
      %v755 = vadd.s32 %v748, %v745
      %v756 = vadd.s32 %v748, %v746
      %vm757 = vcmp.lt.s32.totalorder %v749, 33
      %vm758 = vcmp.lt.s32.totalorder %v750, 33
      %vm759 = vcmp.lt.s32.totalorder %v751, 33
      %vm760 = vcmp.lt.s32.totalorder %v752, 33
      %vm761 = vcmp.lt.s32.totalorder %v753, 33
      %vm762 = vcmp.lt.s32.totalorder %v754, 33
      %vm763 = vcmp.lt.s32.totalorder %v755, 33
      %vm764 = vcmp.lt.s32.totalorder %v756, 33
      %v765 = vsel %vm757, 1, 0
      %v766 = vsel %vm758, 1, 0
      %v767 = vsel %vm759, 1, 0
      %v768 = vsel %vm760, 1, 0
      %v769 = vsel %vm761, 1, 0
      %v770 = vsel %vm762, 1, 0
      %v771 = vsel %vm763, 1, 0
      %v772 = vsel %vm764, 1, 0
      %v773 = vcvt.s32.f32 %v765
      %v774 = vcvt.s32.f32 %v766
      %v775 = vcvt.s32.f32 %v767
      %v776 = vcvt.s32.f32 %v768
      %v777 = vcvt.s32.f32 %v769
      %v778 = vcvt.s32.f32 %v770
      %v779 = vcvt.s32.f32 %v771
      %v780 = vcvt.s32.f32 %v772
      %v781 = vadd.f32 %v698, %v730
      %v782 = vadd.f32 %v699, %v731
      %v783 = vadd.f32 %v700, %v732
      %v784 = vadd.f32 %v701, %v733
      %v785 = vadd.f32 %v702, %v734
      %v786 = vadd.f32 %v703, %v735
      %v787 = vadd.f32 %v704, %v736
      %v788 = vadd.f32 %v705, %v737
      %v789 = vmul.f32 %v698, %v730
      %v790 = vmul.f32 %v699, %v731
      %v791 = vmul.f32 %v700, %v732
      %v792 = vmul.f32 %v701, %v733
      %v793 = vmul.f32 %v702, %v734
      %v794 = vmul.f32 %v703, %v735
      %v795 = vmul.f32 %v704, %v736
      %v796 = vmul.f32 %v705, %v737
      %v797 = vrsqrt.pop %v789
      %v798 = vmul.f32 %v789, %v797
      %vm799 = vcmp.eq.f32.partialorder %v789, inf
      %v800 = vsel %vm799, %v789, %v798
      %vm801 = vcmp.eq.f32.partialorder %v789, 0.0
      %v802 = vand.u32 %v789, 2147483648
      %v803 = vsel %vm801, %v802, %v800
      %v804 = vrsqrt.pop %v790
      %v805 = vmul.f32 %v790, %v804
      %vm806 = vcmp.eq.f32.partialorder %v790, inf
      %v807 = vsel %vm806, %v790, %v805
      %vm808 = vcmp.eq.f32.partialorder %v790, 0.0
      %v809 = vand.u32 %v790, 2147483648
      %v810 = vsel %vm808, %v809, %v807
      %v811 = vrsqrt.pop %v791
      %v812 = vmul.f32 %v791, %v811
      %vm813 = vcmp.eq.f32.partialorder %v791, inf
      %v814 = vsel %vm813, %v791, %v812
      %vm815 = vcmp.eq.f32.partialorder %v791, 0.0
      %v816 = vand.u32 %v791, 2147483648
      %v817 = vsel %vm815, %v816, %v814
      %v818 = vrsqrt.pop %v792
      %v819 = vmul.f32 %v792, %v818
      %vm820 = vcmp.eq.f32.partialorder %v792, inf
      %v821 = vsel %vm820, %v792, %v819
      %vm822 = vcmp.eq.f32.partialorder %v792, 0.0
      %v823 = vand.u32 %v792, 2147483648
      %v824 = vsel %vm822, %v823, %v821
      %v825 = vrsqrt.pop %v793
      %v826 = vmul.f32 %v793, %v825
      %vm827 = vcmp.eq.f32.partialorder %v793, inf
      %v828 = vsel %vm827, %v793, %v826
      %vm829 = vcmp.eq.f32.partialorder %v793, 0.0
      %v830 = vand.u32 %v793, 2147483648
      %v831 = vsel %vm829, %v830, %v828
      %v832 = vrsqrt.pop %v794
      %v833 = vmul.f32 %v794, %v832
      %vm834 = vcmp.eq.f32.partialorder %v794, inf
      %v835 = vsel %vm834, %v794, %v833
      %vm836 = vcmp.eq.f32.partialorder %v794, 0.0
      %v837 = vand.u32 %v794, 2147483648
      %v838 = vsel %vm836, %v837, %v835
      %v839 = vrsqrt.pop %v795
      %v840 = vmul.f32 %v795, %v839
      %vm841 = vcmp.eq.f32.partialorder %v795, inf
      %v842 = vsel %vm841, %v795, %v840
      %vm843 = vcmp.eq.f32.partialorder %v795, 0.0
      %v844 = vand.u32 %v795, 2147483648
      %v845 = vsel %vm843, %v844, %v842
      %v846 = vrsqrt.pop %v796
      %v847 = vmul.f32 %v796, %v846
      %vm848 = vcmp.eq.f32.partialorder %v796, inf
      %v849 = vsel %vm848, %v796, %v847
      %vm850 = vcmp.eq.f32.partialorder %v796, 0.0
      %v851 = vand.u32 %v796, 2147483648
      %v852 = vsel %vm850, %v851, %v849
      %v853 = vmul.f32 %v803, 2.0
      %v854 = vmul.f32 %v810, 2.0
      %v855 = vmul.f32 %v817, 2.0
      %v856 = vmul.f32 %v824, 2.0
      %v857 = vmul.f32 %v831, 2.0
      %v858 = vmul.f32 %v838, 2.0
      %v859 = vmul.f32 %v845, 2.0
      %v860 = vmul.f32 %v852, 2.0
      %v861 = vsub.f32 %v781, %v853
      %v862 = vsub.f32 %v782, %v854
      %v863 = vsub.f32 %v783, %v855
      %v864 = vsub.f32 %v784, %v856
      %v865 = vsub.f32 %v785, %v857
      %v866 = vsub.f32 %v786, %v858
      %v867 = vsub.f32 %v787, %v859
      %v868 = vsub.f32 %v788, %v860
      %v869 = vmul.f32 %v861, %v773
      %v870 = vmul.f32 %v862, %v774
      %v871 = vmul.f32 %v863, %v775
      %v872 = vmul.f32 %v864, %v776
      %v873 = vmul.f32 %v865, %v777
      %v874 = vmul.f32 %v866, %v778
      %v875 = vmul.f32 %v867, %v779
      %v876 = vmul.f32 %v868, %v780
      %v877 = vmul.f32 %v730, %v773
      %v878 = vmul.f32 %v731, %v774
      %v879 = vmul.f32 %v732, %v775
      %v880 = vmul.f32 %v733, %v776
      %v881 = vmul.f32 %v734, %v777
      %v882 = vmul.f32 %v735, %v778
      %v883 = vmul.f32 %v736, %v779
      %v884 = vmul.f32 %v737, %v780
      %v885 = vlog2.pop %v698
      %v886 = vmul.f32 %v885, 0.6931472
      %v887 = vlog2.pop %v699
      %v888 = vmul.f32 %v887, 0.6931472
      %v889 = vlog2.pop %v700
      %v890 = vmul.f32 %v889, 0.6931472
      %v891 = vlog2.pop %v701
      %v892 = vmul.f32 %v891, 0.6931472
      %v893 = vlog2.pop %v702
      %v894 = vmul.f32 %v893, 0.6931472
      %v895 = vlog2.pop %v703
      %v896 = vmul.f32 %v895, 0.6931472
      %v897 = vlog2.pop %v704
      %v898 = vmul.f32 %v897, 0.6931472
      %v899 = vlog2.pop %v705
      %v900 = vmul.f32 %v899, 0.6931472
      %v901 = vlog2.pop %v730
      %v902 = vmul.f32 %v901, 0.6931472
      %v903 = vlog2.pop %v731
      %v904 = vmul.f32 %v903, 0.6931472
      %v905 = vlog2.pop %v732
      %v906 = vmul.f32 %v905, 0.6931472
      %v907 = vlog2.pop %v733
      %v908 = vmul.f32 %v907, 0.6931472
      %v909 = vlog2.pop %v734
      %v910 = vmul.f32 %v909, 0.6931472
      %v911 = vlog2.pop %v735
      %v912 = vmul.f32 %v911, 0.6931472
      %v913 = vlog2.pop %v736
      %v914 = vmul.f32 %v913, 0.6931472
      %v915 = vlog2.pop %v737
      %v916 = vmul.f32 %v915, 0.6931472
      %v917 = vsub.f32 %v886, %v902
      %v918 = vsub.f32 %v888, %v904
      %v919 = vsub.f32 %v890, %v906
      %v920 = vsub.f32 %v892, %v908
      %v921 = vsub.f32 %v894, %v910
      %v922 = vsub.f32 %v896, %v912
      %v923 = vsub.f32 %v898, %v914
      %v924 = vsub.f32 %v900, %v916
      %v925 = vand.u32 2147483647, %v917
      %v926 = vand.u32 2147483647, %v918
      %v927 = vand.u32 2147483647, %v919
      %v928 = vand.u32 2147483647, %v920
      %v929 = vand.u32 2147483647, %v921
      %v930 = vand.u32 2147483647, %v922
      %v931 = vand.u32 2147483647, %v923
      %v932 = vand.u32 2147483647, %v924
      %v933 = vmul.f32 %v925, 0.5
      %v934 = vmul.f32 %v926, 0.5
      %v935 = vmul.f32 %v927, 0.5
      %v936 = vmul.f32 %v928, 0.5
      %v937 = vmul.f32 %v929, 0.5
      %v938 = vmul.f32 %v930, 0.5
      %v939 = vmul.f32 %v931, 0.5
      %v940 = vmul.f32 %v932, 0.5
      %v941 = vmul.f32 %v933, %v773
      %v942 = vmul.f32 %v934, %v774
      %v943 = vmul.f32 %v935, %v775
      %v944 = vmul.f32 %v936, %v776
      %v945 = vmul.f32 %v937, %v777
      %v946 = vmul.f32 %v938, %v778
      %v947 = vmul.f32 %v939, %v779
      %v948 = vmul.f32 %v940, %v780
      %v949 = vadd.f32 %v869, %v873
      %v950 = vadd.f32 %v870, %v874
      %v951 = vadd.f32 %v871, %v875
      %v952 = vadd.f32 %v872, %v876
      %v953 = vadd.f32 %v949, %v951
      %v954 = vadd.f32 %v950, %v952
      %v955 = vadd.f32 %v953, %v954
      %956 = vst [vmem:[%s240] sm:$0xff] %v955
      %v957 = vadd.f32 %v877, %v881
      %v958 = vadd.f32 %v878, %v882
      %v959 = vadd.f32 %v879, %v883
      %v960 = vadd.f32 %v880, %v884
      %v961 = vadd.f32 %v957, %v959
      %v962 = vadd.f32 %v958, %v960
      %v963 = vadd.f32 %v961, %v962
      %964 = vst [vmem:[%s240 + $0x8] sm:$0xff] %v963
      %v965 = vadd.f32 %v941, %v945
      %v966 = vadd.f32 %v942, %v946
      %v967 = vadd.f32 %v943, %v947
      %v968 = vadd.f32 %v944, %v948
      %v969 = vadd.f32 %v965, %v967
      %v970 = vadd.f32 %v966, %v968
      %v971 = vadd.f32 %v969, %v970
      %972 = vst [vmem:[%s240 + $0x10] sm:$0xff] %v971
      %p973 = scmp.lt.s32.totalorder %s18, 1
      %s974 = scalar_select %p973, %s18, 1
      %p975 = scmp.lt.s32.totalorder %s19, 0
      %s976 = scalar_select %p975, %s19, 0
      %s977 = smul.addr %s976, 3
      %s978 = smul.addr %s974, 3
      %s979 = sadd.s32 %s977, %s978
      %s980 = smul.addr %s979, 8
      %s981 = scalar_lea.vmem %s3, %s980
      // Predicated region
      $region33: #{stft_loss.1} parent=31 // pred_check
        %p982 = pneg %p123
      $region34: #{stft_loss.1} parent=31 // pred_check_branch
        %984 = sbr.rel (%p982) target = $region36
      $region35: #{stft_loss.1} parent=31 // pred_region
        _
      $region36: #{stft_loss.1} parent=31 // pred_fallthru
        _
    $region32: #{stft_loss.1} parent=5 // pred_fallthru
      _
    %p985 = scmp.le.s32.totalorder 2, %s9
    // Predicated region
    $region37: #{stft_loss.1} parent=5 // pred_check
      %p986 = pneg %p985
    $region38: #{stft_loss.1} parent=5 // pred_check_branch
      %988 = sbr.rel (%p986) target = $region40
    $region39: #{stft_loss.1} parent=5 // pred_region
      %s989 = ssub.s32 %s9, 2
      // Predicated region
      $region41: #{stft_loss.1} parent=39 // pred_check
        %p990 = pneg %p129
      $region42: #{stft_loss.1} parent=39 // pred_check_branch
        %992 = sbr.rel (%p990) target = $region44
      $region43: #{stft_loss.1} parent=39 // pred_region
        %p993 = scmp.lt.s32.totalorder %s20, 1
        %s994 = scalar_select %p993, %s20, 1
        %p995 = scmp.lt.s32.totalorder %s21, 0
        %s996 = scalar_select %p995, %s21, 0
        %s997 = smul.addr %s996, 3
        %s998 = smul.addr %s994, 3
        %s999 = sadd.s32 %s997, %s998
        %s1000 = smul.addr %s999, 8
        %s1001 = scalar_lea.vmem %s3, %s1000
      $region44: #{stft_loss.1} parent=39 // pred_fallthru
        _
    $region40: #{stft_loss.1} parent=5 // pred_fallthru
      _
  $region6: #{stft_loss.1} parent=0 // loop_footer
    %s13 = sadd.s32 1, %s9
  $region7: #{stft_loss.1} parent=0 // loop_footer_branch
    %8 = sbr.rel target = $region3
  $region8: #{stft_loss.1} parent=0 // loop_exit
    _

</llo_original>
